<compile_context>
chip_gen: v6e
topology: v6e:2x2x1
jax: 0.10.0
libtpu: 0.0.40
codegen_flags: <defaults>
</compile_context>

<pallas_src>
import functools

import jax
import jax.numpy as jnp
from jax.experimental import pallas as pl
from jax.experimental.pallas import tpu as pltpu

_VMEM_LIMIT = 32 * 1024 * 1024          # requested scoped VMEM
_VMEM_BUDGET = 24 * 1024 * 1024         # tile-sizing budget (leave headroom)


def _round_up(x, m):
    return (x + m - 1) // m * m


def _pick_tile_m(mp, kdim, co_p, candidates):
    """Largest M-tile dividing mp whose double-buffered working set fits VMEM."""
    for c in candidates:
        if mp % c:
            continue
        vmem = (2 * c * kdim * 2          # patches tile, bf16, double-buffered
                + 2 * kdim * co_p * 2     # weights, bf16, double-buffered
                + 2 * c * co_p * 4        # output tile (worst case f32)
                + 4 * 8 * co_p * 4)       # stat partials
        if vmem <= _VMEM_BUDGET:
            return c
    return 8                              # mp is always a multiple of 8 here


def _apply_act(y, act):
    if act is None:               # nn.Identity()
        return y
    if act == "relu":
        return jnp.maximum(y, 0.0)
    if act == "silu":
        return y * jax.nn.sigmoid(y)
    if act == "gelu":
        return jax.nn.gelu(y)
    raise ValueError(f"unsupported act: {act}")


# ---------------------------------------------------------------------------
# Kernel A (training): conv-as-matmul + per-block batch-stat partials
# ---------------------------------------------------------------------------
def _conv_stats_kernel(p_ref, w_ref, y_ref, sum_ref, sq_ref):
    # p_ref: (TM, K) bf16, w_ref: (K, Cp) bf16, y_ref: (TM, Cp) bf16
    # sum_ref / sq_ref: (1, 8, Cp) f32 per-block partials
    y = jnp.dot(p_ref[...], w_ref[...], preferred_element_type=jnp.float32)
    y_ref[...] = y.astype(y_ref.dtype)           # bf16 intermediate to HBM
    tm, cp = y.shape
    yr = y.reshape(tm // 8, 8, cp)               # sublane-group split (cheap)
    sum_ref[...] = jnp.sum(yr, axis=0)[None]     # stats from f32, pre-cast
    sq_ref[...] = jnp.sum(yr * yr, axis=0)[None]


# ---------------------------------------------------------------------------
# Kernel A' (eval): conv-as-matmul with folded BN + activation epilogue
# ---------------------------------------------------------------------------
def _conv_affine_kernel(p_ref, w_ref, shift_ref, o_ref, *, act):
    # w columns pre-scaled by gamma/sqrt(var+eps); shift = beta - mean*scale
    y = jnp.dot(p_ref[...], w_ref[...], preferred_element_type=jnp.float32)
    y = y + shift_ref[...]
    o_ref[...] = _apply_act(y, act).astype(o_ref.dtype)


# ---------------------------------------------------------------------------
# Kernel B (training): per-channel affine (folded BatchNorm) + activation
# ---------------------------------------------------------------------------
def _bn_act_kernel(y_ref, scale_ref, shift_ref, o_ref, *, act):
    y = y_ref[...].astype(jnp.float32) * scale_ref[...] + shift_ref[...]
    o_ref[...] = _apply_act(y, act).astype(o_ref.dtype)


# ---------------------------------------------------------------------------
# Wrapper
# ---------------------------------------------------------------------------
def conv_norm_layer(
    x_nchw,
    conv_w,                     # (Cout, Cin, kh, kw) -- PyTorch OIHW
    gamma, beta,                # (Cout,)
    running_mean, running_var,  # (Cout,)  used only when training=False
    *,
    stride,
    padding=None,
    eps=1e-5,
    act=None,
    training=True,
):
    co, ci, kh, kw = conv_w.shape
    pad = (kh - 1) // 2 if padding is None else padding
    N, C, H, W = x_nchw.shape
    assert C == ci
    out_dtype = jnp.float32

    # --- glue: NCHW -> NHWC (bf16), im2col patch extraction ------------------
    x = jnp.transpose(x_nchw, (0, 2, 3, 1)).astype(jnp.bfloat16)
    xp = jnp.pad(x, ((0, 0), (pad, pad), (pad, pad), (0, 0)))
    Ho = (H + 2 * pad - kh) // stride + 1
    Wo = (W + 2 * pad - kw) // stride + 1
    cols = []
    for di in range(kh):
        for dj in range(kw):
            cols.append(
                xp[:, di:di + stride * Ho:stride, dj:dj + stride * Wo:stride, :]
            )
    patches = jnp.stack(cols, axis=3)                    # (N, Ho, Wo, kh*kw, Cin)
    Kdim = kh * kw * ci
    M = N * Ho * Wo
    patches = patches.reshape(M, Kdim)                   # bf16 [M, K]

    Mp = _round_up(M, 8)
    if Mp != M:                                          # at most 7 zero rows
        patches = jnp.pad(patches, ((0, Mp - M), (0, 0)))

    # lane-dense output channel dimension
    co_p = _round_up(co, 128)
    gamma_p = jnp.zeros((co_p,), jnp.float32).at[:co].set(gamma.astype(jnp.float32))
    beta_p = jnp.zeros((co_p,), jnp.float32).at[:co].set(beta.astype(jnp.float32))

    # (Cout, Cin, kh, kw) -> (kh, kw, Cin, Cout) -> (K, Cout), matches im2col order
    w2d = jnp.transpose(conv_w, (2, 3, 1, 0)).reshape(Kdim, co).astype(jnp.float32)

    tm_a = _pick_tile_m(Mp, Kdim, co_p, (512, 256, 128, 64, 32, 16, 8))
    grid_a = (Mp // tm_a,)
    n_blk = grid_a[0]
    cparams = pltpu.CompilerParams(
        dimension_semantics=("parallel",),
        vmem_limit_bytes=_VMEM_LIMIT,
    )

    if not training:
        # ---- eval fast path: single fused pass, no stats, no intermediate ----
        rv = jnp.zeros((co_p,), jnp.float32).at[:co].set(running_var.astype(jnp.float32))
        rm = jnp.zeros((co_p,), jnp.float32).at[:co].set(running_mean.astype(jnp.float32))
        scale = gamma_p * jax.lax.rsqrt(rv + eps)
        shift = beta_p - rm * scale
        w2d_p = jnp.zeros((Kdim, co_p), jnp.float32).at[:, :co].set(w2d)
        w_scaled = (w2d_p * scale[None, :]).astype(jnp.bfloat16)

        cost = pl.CostEstimate(
            flops=2 * Mp * Kdim * co_p,
            transcendentals=0 if act in (None, "relu") else Mp * co_p,
            bytes_accessed=Mp * Kdim * 2 + Kdim * co_p * 2 + Mp * co_p * 4,
        )
        out2d = pl.pallas_call(
            functools.partial(_conv_affine_kernel, act=act),
            out_shape=jax.ShapeDtypeStruct((Mp, co_p), out_dtype),
            grid_spec=pltpu.PrefetchScalarGridSpec(
                num_scalar_prefetch=0,
                grid=grid_a,
                in_specs=[
                    pl.BlockSpec((tm_a, Kdim), lambda i: (i, 0)),
                    pl.BlockSpec((Kdim, co_p), lambda i: (0, 0)),
                    pl.BlockSpec((1, co_p), lambda i: (0, 0)),
                ],
                out_specs=pl.BlockSpec((tm_a, co_p), lambda i: (i, 0)),
            ),
            compiler_params=cparams,
            cost_estimate=cost,
        )(patches, w_scaled, shift.reshape(1, co_p))
        out = out2d[:M, :co].reshape(N, Ho, Wo, co)
        return jnp.transpose(out, (0, 3, 1, 2)).astype(out_dtype)

    # ---- training path: Kernel A (matmul + stats) ----------------------------
    w2d_p = jnp.zeros((Kdim, co_p), jnp.bfloat16).at[:, :co].set(w2d.astype(jnp.bfloat16))

    cost_a = pl.CostEstimate(
        flops=2 * Mp * Kdim * co_p + 3 * Mp * co_p,
        transcendentals=0,
        bytes_accessed=Mp * Kdim * 2 + Kdim * co_p * 2 + Mp * co_p * 2
        + 2 * n_blk * 8 * co_p * 4,
    )
    y, s1, s2 = pl.pallas_call(
        _conv_stats_kernel,
        out_shape=(
            jax.ShapeDtypeStruct((Mp, co_p), jnp.bfloat16),       # bf16 intermediate
            jax.ShapeDtypeStruct((n_blk, 8, co_p), jnp.float32),  # partial sums
            jax.ShapeDtypeStruct((n_blk, 8, co_p), jnp.float32),  # partial sq sums
        ),
        grid_spec=pltpu.PrefetchScalarGridSpec(
            num_scalar_prefetch=0,
            grid=grid_a,
            in_specs=[
                pl.BlockSpec((tm_a, Kdim), lambda i: (i, 0)),
                pl.BlockSpec((Kdim, co_p), lambda i: (0, 0)),
            ],
            out_specs=[
                pl.BlockSpec((tm_a, co_p), lambda i: (i, 0)),
                pl.BlockSpec((1, 8, co_p), lambda i: (i, 0, 0)),
                pl.BlockSpec((1, 8, co_p), lambda i: (i, 0, 0)),
            ],
        ),
        compiler_params=cparams,
        cost_estimate=cost_a,
    )(patches, w2d_p)

    # --- tiny partial reduction + BN fold (per-channel scalars) in plain JAX ---
    s1 = s1.sum(axis=(0, 1))
    s2 = s2.sum(axis=(0, 1))
    mean = s1 / M
    # TODO(synk): single-pass E[y^2]-mean^2 can lose precision when |mean|>>std;
    # a Welford / offset-centered accumulation would be more robust.
    var = jnp.maximum(s2 / M - mean * mean, 0.0)   # PyTorch BN: biased batch var
    scale = gamma_p * jax.lax.rsqrt(var + eps)
    shift = beta_p - mean * scale

    # ---- Kernel B: normalize + activation (big tiles, memory-bound) ----------
    tm_b = _pick_tile_m(Mp, 0, co_p, (2048, 1024, 512, 256, 128, 64, 32, 16, 8))
    grid_b = (Mp // tm_b,)
    cost_b = pl.CostEstimate(
        flops=2 * Mp * co_p,
        transcendentals=0 if act in (None, "relu") else Mp * co_p,
        bytes_accessed=Mp * co_p * 2 + Mp * co_p * 4 + 2 * co_p * 4,
    )
    out2d = pl.pallas_call(
        functools.partial(_bn_act_kernel, act=act),
        out_shape=jax.ShapeDtypeStruct((Mp, co_p), out_dtype),
        grid_spec=pltpu.PrefetchScalarGridSpec(
            num_scalar_prefetch=0,
            grid=grid_b,
            in_specs=[
                pl.BlockSpec((tm_b, co_p), lambda i: (i, 0)),
                pl.BlockSpec((1, co_p), lambda i: (0, 0)),
                pl.BlockSpec((1, co_p), lambda i: (0, 0)),
            ],
            out_specs=pl.BlockSpec((tm_b, co_p), lambda i: (i, 0)),
        ),
        compiler_params=cparams,
        cost_estimate=cost_b,
    )(y, scale.reshape(1, co_p), shift.reshape(1, co_p))

    out = out2d[:M, :co].reshape(N, Ho, Wo, co)
    return jnp.transpose(out, (0, 3, 1, 2)).astype(out_dtype)   # back to NCHW


# ---------------------------------------------------------------------------
# Reference (pure JAX, f32) for correctness check
# ---------------------------------------------------------------------------
def _reference(x, conv_w, gamma, beta, rm, rv, *, stride, padding, eps, act, training):
    co, ci, kh, kw = conv_w.shape
    pad = (kh - 1) // 2 if padding is None else padding
    y = jax.lax.conv_general_dilated(
        x.astype(jnp.float32), conv_w.astype(jnp.float32),
        window_strides=(stride, stride),
        padding=[(pad, pad), (pad, pad)],
        dimension_numbers=("NCHW", "OIHW", "NCHW"))
    if training:
        mean = y.mean(axis=(0, 2, 3))
        var = y.var(axis=(0, 2, 3))      # biased, as used by BN for normalization
    else:
        mean, var = rm, rv
    yn = (y - mean[None, :, None, None]) / jnp.sqrt(var + eps)[None, :, None, None]
    yn = yn * gamma[None, :, None, None] + beta[None, :, None, None]
    if act == "relu":
        yn = jnp.maximum(yn, 0.0)
    elif act == "silu":
        yn = yn * jax.nn.sigmoid(yn)
    return yn


if __name__ == "__main__":
    # ConvNormLayer(ch_in=4, ch_out=8, kernel_size=3, stride=1, act='relu')
    N, C_IN, H, W = 2, 4, 16, 16
    C_OUT, K, STRIDE = 8, 3, 1
    ACT = "relu"
    EPS = 1e-5

    key = jax.random.PRNGKey(0)
    kx, kw_, kg, kb, krm, krv = jax.random.split(key, 6)

    x = jax.random.normal(kx, (N, C_IN, H, W), dtype=jnp.float32)
    conv_w = jax.random.normal(kw_, (C_OUT, C_IN, K, K), dtype=jnp.float32) * 0.1
    gamma = 1.0 + 0.1 * jax.random.normal(kg, (C_OUT,), dtype=jnp.float32)
    beta = 0.1 * jax.random.normal(kb, (C_OUT,), dtype=jnp.float32)
    running_mean = 0.1 * jax.random.normal(krm, (C_OUT,), dtype=jnp.float32)
    running_var = 1.0 + 0.1 * jnp.abs(jax.random.normal(krv, (C_OUT,), dtype=jnp.float32))

    fwd = jax.jit(
        conv_norm_layer,
        static_argnames=("stride", "padding", "eps", "act", "training"),
    )

    # bf16 MXU inputs + bf16 intermediate -> bf16-appropriate tolerance
    TOL = 3e-2

    # training mode (PyTorch nn.Module default: batch statistics)
    out_tr = fwd(
        x, conv_w, gamma, beta, running_mean, running_var,
        stride=STRIDE, padding=None, eps=EPS, act=ACT, training=True,
    )
    out_tr = jax.block_until_ready(out_tr)
    ref_tr = _reference(
        x, conv_w, gamma, beta, running_mean, running_var,
        stride=STRIDE, padding=None, eps=EPS, act=ACT, training=True,
    )
    assert out_tr.shape == (N, C_OUT, H, W), out_tr.shape
    assert jnp.allclose(out_tr, ref_tr, atol=TOL, rtol=TOL), \
        float(jnp.max(jnp.abs(out_tr - ref_tr)))

    # eval mode (running stats, fully fused single-pass path)
    out_ev = fwd(
        x, conv_w, gamma, beta, running_mean, running_var,
        stride=STRIDE, padding=None, eps=EPS, act=ACT, training=False,
    )
    out_ev = jax.block_until_ready(out_ev)
    ref_ev = _reference(
        x, conv_w, gamma, beta, running_mean, running_var,
        stride=STRIDE, padding=None, eps=EPS, act=ACT, training=False,
    )
    assert out_ev.shape == (N, C_OUT, H, W), out_ev.shape
    assert jnp.allclose(out_ev, ref_ev, atol=TOL, rtol=TOL), \
        float(jnp.max(jnp.abs(out_ev - ref_ev)))

    print("KERNEL_OK")
</pallas_src>

<mosaic_0001>
module attributes {stable_mosaic.version = 11 : i64} {
  func.func @_conv_stats_kernel(%arg0: i32, %arg1: memref<512x36xbf16, #tpu.memory_space<vmem>>, %arg2: memref<36x128xbf16, #tpu.memory_space<vmem>>, %arg3: memref<512x128xbf16, #tpu.memory_space<vmem>>, %arg4: memref<1x8x128xf32, #tpu.memory_space<vmem>>, %arg5: memref<1x8x128xf32, #tpu.memory_space<vmem>>) attributes {dimension_semantics = [#tpu.dimension_semantics<parallel>], iteration_bounds = array<i64: 1>, scalar_prefetch = 0 : i64, scratch_operands = 0 : i64, tpu.core_type = #tpu.core_type<tc>, window_params = [{transform_indices = @transform_0, window_bounds = array<i64: 512, 36>}, {pipeline_mode = #tpu.pipeline_mode<synchronous>, transform_indices = @transform_1, window_bounds = array<i64: 36, 128>}, {transform_indices = @transform_2, window_bounds = array<i64: 512, 128>}, {transform_indices = @transform_3, window_bounds = array<i64: 1, 8, 128>}, {transform_indices = @transform_4, window_bounds = array<i64: 1, 8, 128>}]} {
    %c0 = arith.constant 0 : index
    %c0_0 = arith.constant 0 : index
    %0 = vector.load %arg1[%c0, %c0_0] : memref<512x36xbf16, #tpu.memory_space<vmem>>, vector<512x36xbf16>
    %c0_1 = arith.constant 0 : index
    %c0_2 = arith.constant 0 : index
    %1 = vector.load %arg2[%c0_1, %c0_2] : memref<36x128xbf16, #tpu.memory_space<vmem>>, vector<36x128xbf16>
    %cst = arith.constant dense<0.000000e+00> : vector<512x128xf32>
    %2 = tpu.matmul %0, %1, %cst {dimension_numbers = #tpu.dot_dimension_numbers<[1], [0], [0], [1], [0, 0, 1, 1], [], []>} : vector<512x36xbf16>, vector<36x128xbf16>, vector<512x128xf32> -> vector<512x128xf32>
    %3 = arith.truncf %2 : vector<512x128xf32> to vector<512x128xbf16>
    %c0_3 = arith.constant 0 : index
    %c0_4 = arith.constant 0 : index
    %4 = vector.load %arg3[%c0_3, %c0_4] : memref<512x128xbf16, #tpu.memory_space<vmem>>, vector<512x128xbf16>
    tpu.vector_store %arg3[%c0_3, %c0_4], %3 {strides = array<i32>} : memref<512x128xbf16, #tpu.memory_space<vmem>>, vector<512x128xbf16>,
    %5 = vector.shape_cast %2 : vector<512x128xf32> to vector<64x8x128xf32>
    %cst_5 = arith.constant dense<0.000000e+00> : vector<8x128xf32>
    %6 = vector.multi_reduction <add>, %5, %cst_5 [0] : vector<64x8x128xf32> to vector<8x128xf32>
    %7 = vector.shape_cast %6 : vector<8x128xf32> to vector<1x8x128xf32>
    %c0_6 = arith.constant 0 : index
    %c0_7 = arith.constant 0 : index
    %c0_8 = arith.constant 0 : index
    %8 = vector.load %arg4[%c0_6, %c0_7, %c0_8] : memref<1x8x128xf32, #tpu.memory_space<vmem>>, vector<1x8x128xf32>
    tpu.vector_store %arg4[%c0_6, %c0_7, %c0_8], %7 {strides = array<i32>} : memref<1x8x128xf32, #tpu.memory_space<vmem>>, vector<1x8x128xf32>,
    %9 = arith.mulf %5, %5 : vector<64x8x128xf32>
    %cst_9 = arith.constant dense<0.000000e+00> : vector<8x128xf32>
    %10 = vector.multi_reduction <add>, %9, %cst_9 [0] : vector<64x8x128xf32> to vector<8x128xf32>
    %11 = vector.shape_cast %10 : vector<8x128xf32> to vector<1x8x128xf32>
    %c0_10 = arith.constant 0 : index
    %c0_11 = arith.constant 0 : index
    %c0_12 = arith.constant 0 : index
    %12 = vector.load %arg5[%c0_10, %c0_11, %c0_12] : memref<1x8x128xf32, #tpu.memory_space<vmem>>, vector<1x8x128xf32>
    tpu.vector_store %arg5[%c0_10, %c0_11, %c0_12], %11 {strides = array<i32>} : memref<1x8x128xf32, #tpu.memory_space<vmem>>, vector<1x8x128xf32>,
    return
  }
  func.func @transform_0(%arg0: i32) -> (i32, i32) {
    %c0_i32 = arith.constant 0 : i32
    %c0_i32_0 = arith.constant 0 : i32
    return %arg0, %c0_i32 : i32, i32
  }
  func.func @transform_1(%arg0: i32) -> (i32, i32) {
    %c0_i32 = arith.constant 0 : i32
    %c0_i32_0 = arith.constant 0 : i32
    %c0_i32_1 = arith.constant 0 : i32
    return %c0_i32, %c0_i32_0 : i32, i32
  }
  func.func @transform_2(%arg0: i32) -> (i32, i32) {
    %c0_i32 = arith.constant 0 : i32
    %c0_i32_0 = arith.constant 0 : i32
    return %arg0, %c0_i32 : i32, i32
  }
  func.func @transform_3(%arg0: i32) -> (i32, i32, i32) {
    %c0_i32 = arith.constant 0 : i32
    %c0_i32_0 = arith.constant 0 : i32
    %c0_i32_1 = arith.constant 0 : i32
    return %arg0, %c0_i32, %c0_i32_0 : i32, i32, i32
  }
  func.func @transform_4(%arg0: i32) -> (i32, i32, i32) {
    %c0_i32 = arith.constant 0 : i32
    %c0_i32_0 = arith.constant 0 : i32
    %c0_i32_1 = arith.constant 0 : i32
    return %arg0, %c0_i32, %c0_i32_0 : i32, i32, i32
  }
}

module attributes {stable_mosaic.version = 11 : i64} {
  func.func @_bn_act_kernel(%arg0: i32, %arg1: memref<512x128xbf16, #tpu.memory_space<vmem>>, %arg2: memref<1x128xf32, #tpu.memory_space<vmem>>, %arg3: memref<1x128xf32, #tpu.memory_space<vmem>>, %arg4: memref<512x128xf32, #tpu.memory_space<vmem>>) attributes {dimension_semantics = [#tpu.dimension_semantics<parallel>], iteration_bounds = array<i64: 1>, scalar_prefetch = 0 : i64, scratch_operands = 0 : i64, tpu.core_type = #tpu.core_type<tc>, window_params = [{transform_indices = @transform_0, window_bounds = array<i64: 512, 128>}, {pipeline_mode = #tpu.pipeline_mode<synchronous>, transform_indices = @transform_1, window_bounds = array<i64: 1, 128>}, {pipeline_mode = #tpu.pipeline_mode<synchronous>, transform_indices = @transform_2, window_bounds = array<i64: 1, 128>}, {transform_indices = @transform_3, window_bounds = array<i64: 512, 128>}]} {
    %c0 = arith.constant 0 : index
    %c0_0 = arith.constant 0 : index
    %0 = vector.load %arg1[%c0, %c0_0] : memref<512x128xbf16, #tpu.memory_space<vmem>>, vector<512x128xbf16>
    %1 = arith.extf %0 : vector<512x128xbf16> to vector<512x128xf32>
    %c0_1 = arith.constant 0 : index
    %c0_2 = arith.constant 0 : index
    %2 = vector.load %arg2[%c0_1, %c0_2] : memref<1x128xf32, #tpu.memory_space<vmem>>, vector<1x128xf32>
    %3 = vector.broadcast %2 : vector<1x128xf32> to vector<512x128xf32>
    %4 = arith.mulf %1, %3 : vector<512x128xf32>
    %c0_3 = arith.constant 0 : index
    %c0_4 = arith.constant 0 : index
    %5 = vector.load %arg3[%c0_3, %c0_4] : memref<1x128xf32, #tpu.memory_space<vmem>>, vector<1x128xf32>
    %6 = vector.broadcast %5 : vector<1x128xf32> to vector<512x128xf32>
    %7 = arith.addf %4, %6 : vector<512x128xf32>
    %cst = arith.constant 0.000000e+00 : f32
    %8 = vector.broadcast %cst : f32 to vector<512x128xf32>
    %9 = arith.maximumf %7, %8 : vector<512x128xf32>
    %c0_5 = arith.constant 0 : index
    %c0_6 = arith.constant 0 : index
    %10 = vector.load %arg4[%c0_5, %c0_6] : memref<512x128xf32, #tpu.memory_space<vmem>>, vector<512x128xf32>
    tpu.vector_store %arg4[%c0_5, %c0_6], %9 {strides = array<i32>} : memref<512x128xf32, #tpu.memory_space<vmem>>, vector<512x128xf32>,
    return
  }
  func.func @transform_0(%arg0: i32) -> (i32, i32) {
    %c0_i32 = arith.constant 0 : i32
    %c0_i32_0 = arith.constant 0 : i32
    return %arg0, %c0_i32 : i32, i32
  }
  func.func @transform_1(%arg0: i32) -> (i32, i32) {
    %c0_i32 = arith.constant 0 : i32
    %c0_i32_0 = arith.constant 0 : i32
    %c0_i32_1 = arith.constant 0 : i32
    return %c0_i32, %c0_i32_0 : i32, i32
  }
  func.func @transform_2(%arg0: i32) -> (i32, i32) {
    %c0_i32 = arith.constant 0 : i32
    %c0_i32_0 = arith.constant 0 : i32
    %c0_i32_1 = arith.constant 0 : i32
    return %c0_i32, %c0_i32_0 : i32, i32
  }
  func.func @transform_3(%arg0: i32) -> (i32, i32) {
    %c0_i32 = arith.constant 0 : i32
    %c0_i32_0 = arith.constant 0 : i32
    return %arg0, %c0_i32 : i32, i32
  }
}

</mosaic_0001>

<llo_original>
// kernel: conv_norm_layer.3
$region0: #{conv_norm_layer.3}
  #allocation0 [shape = 'u32[]', space=smem, size = 0x4, offset = 0x4, fixed_abs, tag = 'smem constant byte address 0x4 - core index']
  #allocation1 [shape = 'u32[144,128]{1,0:T(1,128)}', space=vmem, size = 0x12000, scoped, tag = 'internal scratch']
  %s0 = inlined_call_operand.vmem [shape: bf16[512,128], index: 0, kind: input, shape index: {}]
  %s1 = inlined_call_operand.vmem [shape: f32[1,128], index: 1, kind: input, shape index: {}]
  %s2 = inlined_call_operand.vmem [shape: f32[1,128], index: 2, kind: input, shape index: {}]
  %s3 = inlined_call_operand.vmem [shape: f32[512,128], index: 3, kind: output, shape index: {}]
  %s4 = sld [smem:[#allocation0]]
  $region22: #{conv_norm_layer.3} parent=0
    _
  %s6 = ssub.s32 1, %s4
  %s7 = scalar_select 0, %s6, %s4
  // Predicated region
  $region2: #{conv_norm_layer.3} parent=0 // pred_check
    _
  $region3: #{conv_norm_layer.3} parent=0 // pred_check_branch
    %9 = sbr.rel (0) target = $region5
  $region4: #{conv_norm_layer.3} parent=0 // pred_region
    _
  $region5: #{conv_norm_layer.3} parent=0 // pred_fallthru
    _
  // Predicated region
  $region6: #{conv_norm_layer.3} parent=0 // pred_check
    _
  $region7: #{conv_norm_layer.3} parent=0 // pred_check_branch
    %11 = sbr.rel (0) target = $region9
  $region8: #{conv_norm_layer.3} parent=0 // pred_region
    _
  $region9: #{conv_norm_layer.3} parent=0 // pred_fallthru
    _
  // Predicated region
  $region10: #{conv_norm_layer.3} parent=0 // pred_check
    _
  $region11: #{conv_norm_layer.3} parent=0 // pred_check_branch
    %13 = sbr.rel (0) target = $region13
  $region12: #{conv_norm_layer.3} parent=0 // pred_region
    _
  $region13: #{conv_norm_layer.3} parent=0 // pred_fallthru
    _
  %v14 = vld [vmem:[%s0] sm:$0xf]
  %v15 = vld [vmem:[%s0 + $0x4] sm:$0xf]
  %v16 = vld [vmem:[%s0 + $0x8] sm:$0xf]
  %v17 = vld [vmem:[%s0 + $0xc] sm:$0xf]
  %v18 = vld [vmem:[%s0 + $0x10] sm:$0xf]
  %v19 = vld [vmem:[%s0 + $0x14] sm:$0xf]
  %v20 = vld [vmem:[%s0 + $0x18] sm:$0xf]
  %v21 = vld [vmem:[%s0 + $0x1c] sm:$0xf]
  %v22 = vld [vmem:[%s0 + $0x20] sm:$0xf]
  %v23 = vld [vmem:[%s0 + $0x24] sm:$0xf]
  %v24 = vld [vmem:[%s0 + $0x28] sm:$0xf]
  %v25 = vld [vmem:[%s0 + $0x2c] sm:$0xf]
  %v26 = vld [vmem:[%s0 + $0x30] sm:$0xf]
  %v27 = vld [vmem:[%s0 + $0x34] sm:$0xf]
  %v28 = vld [vmem:[%s0 + $0x38] sm:$0xf]
  %v29 = vld [vmem:[%s0 + $0x3c] sm:$0xf]
  %v30 = vld [vmem:[%s0 + $0x40] sm:$0xf]
  %v31 = vld [vmem:[%s0 + $0x44] sm:$0xf]
  %v32 = vld [vmem:[%s0 + $0x48] sm:$0xf]
  %v33 = vld [vmem:[%s0 + $0x4c] sm:$0xf]
  %v34 = vld [vmem:[%s0 + $0x50] sm:$0xf]
  %v35 = vld [vmem:[%s0 + $0x54] sm:$0xf]
  %v36 = vld [vmem:[%s0 + $0x58] sm:$0xf]
  %v37 = vld [vmem:[%s0 + $0x5c] sm:$0xf]
  %v38 = vld [vmem:[%s0 + $0x60] sm:$0xf]
  %v39 = vld [vmem:[%s0 + $0x64] sm:$0xf]
  %v40 = vld [vmem:[%s0 + $0x68] sm:$0xf]
  %v41 = vld [vmem:[%s0 + $0x6c] sm:$0xf]
  %v42 = vld [vmem:[%s0 + $0x70] sm:$0xf]
  %v43 = vld [vmem:[%s0 + $0x74] sm:$0xf]
  %v44 = vld [vmem:[%s0 + $0x78] sm:$0xf]
  %v45 = vld [vmem:[%s0 + $0x7c] sm:$0xf]
  %v46 = vld [vmem:[%s0 + $0x80] sm:$0xf]
  %v47 = vld [vmem:[%s0 + $0x84] sm:$0xf]
  %v48 = vld [vmem:[%s0 + $0x88] sm:$0xf]
  %v49 = vld [vmem:[%s0 + $0x8c] sm:$0xf]
  %v50 = vld [vmem:[%s0 + $0x90] sm:$0xf]
  %v51 = vld [vmem:[%s0 + $0x94] sm:$0xf]
  %v52 = vld [vmem:[%s0 + $0x98] sm:$0xf]
  %v53 = vld [vmem:[%s0 + $0x9c] sm:$0xf]
  %v54 = vld [vmem:[%s0 + $0xa0] sm:$0xf]
  %v55 = vld [vmem:[%s0 + $0xa4] sm:$0xf]
  %v56 = vld [vmem:[%s0 + $0xa8] sm:$0xf]
  %v57 = vld [vmem:[%s0 + $0xac] sm:$0xf]
  %v58 = vld [vmem:[%s0 + $0xb0] sm:$0xf]
  %v59 = vld [vmem:[%s0 + $0xb4] sm:$0xf]
  %v60 = vld [vmem:[%s0 + $0xb8] sm:$0xf]
  %v61 = vld [vmem:[%s0 + $0xbc] sm:$0xf]
  %v62 = vld [vmem:[%s0 + $0xc0] sm:$0xf]
  %v63 = vld [vmem:[%s0 + $0xc4] sm:$0xf]
  %v64 = vld [vmem:[%s0 + $0xc8] sm:$0xf]
  %v65 = vld [vmem:[%s0 + $0xcc] sm:$0xf]
  %v66 = vld [vmem:[%s0 + $0xd0] sm:$0xf]
  %v67 = vld [vmem:[%s0 + $0xd4] sm:$0xf]
  %v68 = vld [vmem:[%s0 + $0xd8] sm:$0xf]
  %v69 = vld [vmem:[%s0 + $0xdc] sm:$0xf]
  %v70 = vld [vmem:[%s0 + $0xe0] sm:$0xf]
  %v71 = vld [vmem:[%s0 + $0xe4] sm:$0xf]
  %v72 = vld [vmem:[%s0 + $0xe8] sm:$0xf]
  %v73 = vld [vmem:[%s0 + $0xec] sm:$0xf]
  %v74 = vld [vmem:[%s0 + $0xf0] sm:$0xf]
  %v75 = vld [vmem:[%s0 + $0xf4] sm:$0xf]
  %v76 = vld [vmem:[%s0 + $0xf8] sm:$0xf]
  %v77 = vld [vmem:[%s0 + $0xfc] sm:$0xf]
  %v78 = vunpack.c.l.bf16 %v14
  %v79 = vunpack.c.l.bf16 %v15
  %v80 = vunpack.c.l.bf16 %v16
  %v81 = vunpack.c.l.bf16 %v17
  %v82 = vunpack.c.l.bf16 %v18
  %v83 = vunpack.c.l.bf16 %v19
  %v84 = vunpack.c.l.bf16 %v20
  %v85 = vunpack.c.l.bf16 %v21
  %v86 = vunpack.c.l.bf16 %v22
  %v87 = vunpack.c.l.bf16 %v23
  %v88 = vunpack.c.l.bf16 %v24
  %v89 = vunpack.c.l.bf16 %v25
  %v90 = vunpack.c.l.bf16 %v26
  %v91 = vunpack.c.l.bf16 %v27
  %v92 = vunpack.c.l.bf16 %v28
  %v93 = vunpack.c.l.bf16 %v29
  %v94 = vunpack.c.l.bf16 %v30
  %v95 = vunpack.c.l.bf16 %v31
  %v96 = vunpack.c.l.bf16 %v32
  %v97 = vunpack.c.l.bf16 %v33
  %v98 = vunpack.c.l.bf16 %v34
  %v99 = vunpack.c.l.bf16 %v35
  %v100 = vunpack.c.l.bf16 %v36
  %v101 = vunpack.c.l.bf16 %v37
  %v102 = vunpack.c.l.bf16 %v38
  %v103 = vunpack.c.l.bf16 %v39
  %v104 = vunpack.c.l.bf16 %v40
  %v105 = vunpack.c.l.bf16 %v41
  %v106 = vunpack.c.l.bf16 %v42
  %v107 = vunpack.c.l.bf16 %v43
  %v108 = vunpack.c.l.bf16 %v44
  %v109 = vunpack.c.l.bf16 %v45
  %v110 = vunpack.c.l.bf16 %v46
  %v111 = vunpack.c.l.bf16 %v47
  %v112 = vunpack.c.l.bf16 %v48
  %v113 = vunpack.c.l.bf16 %v49
  %v114 = vunpack.c.l.bf16 %v50
  %v115 = vunpack.c.l.bf16 %v51
  %v116 = vunpack.c.l.bf16 %v52
  %v117 = vunpack.c.l.bf16 %v53
  %v118 = vunpack.c.l.bf16 %v54
  %v119 = vunpack.c.l.bf16 %v55
  %v120 = vunpack.c.l.bf16 %v56
  %v121 = vunpack.c.l.bf16 %v57
  %v122 = vunpack.c.l.bf16 %v58
  %v123 = vunpack.c.l.bf16 %v59
  %v124 = vunpack.c.l.bf16 %v60
  %v125 = vunpack.c.l.bf16 %v61
  %v126 = vunpack.c.l.bf16 %v62
  %v127 = vunpack.c.l.bf16 %v63
  %v128 = vunpack.c.l.bf16 %v64
  %v129 = vunpack.c.l.bf16 %v65
  %v130 = vunpack.c.l.bf16 %v66
  %v131 = vunpack.c.l.bf16 %v67
  %v132 = vunpack.c.l.bf16 %v68
  %v133 = vunpack.c.l.bf16 %v69
  %v134 = vunpack.c.l.bf16 %v70
  %v135 = vunpack.c.l.bf16 %v71
  %v136 = vunpack.c.l.bf16 %v72
  %v137 = vunpack.c.l.bf16 %v73
  %v138 = vunpack.c.l.bf16 %v74
  %v139 = vunpack.c.l.bf16 %v75
  %v140 = vunpack.c.l.bf16 %v76
  %v141 = vunpack.c.l.bf16 %v77
  %v142 = vld [vmem:[%s1] sm:$0x1]
  %v144 = vlaneseq
  %v145 = vshrl.u32 %v144, 7
  %v146 = vsub.s32 0, %v145
  %v147 = vrot.slane %v142, %v146
  %v149 = vmul.f32 %v78, %v147
  %v150 = vmul.f32 %v79, %v147
  %v151 = vmul.f32 %v80, %v147
  %v152 = vmul.f32 %v81, %v147
  %v153 = vmul.f32 %v82, %v147
  %v154 = vmul.f32 %v83, %v147
  %v155 = vmul.f32 %v84, %v147
  %v156 = vmul.f32 %v85, %v147
  %v157 = vmul.f32 %v86, %v147
  %v158 = vmul.f32 %v87, %v147
  %v159 = vmul.f32 %v88, %v147
  %v160 = vmul.f32 %v89, %v147
  %v161 = vmul.f32 %v90, %v147
  %v162 = vmul.f32 %v91, %v147
  %v163 = vmul.f32 %v92, %v147
  %v164 = vmul.f32 %v93, %v147
  %v165 = vmul.f32 %v94, %v147
  %v166 = vmul.f32 %v95, %v147
  %v167 = vmul.f32 %v96, %v147
  %v168 = vmul.f32 %v97, %v147
  %v169 = vmul.f32 %v98, %v147
  %v170 = vmul.f32 %v99, %v147
  %v171 = vmul.f32 %v100, %v147
  %v172 = vmul.f32 %v101, %v147
  %v173 = vmul.f32 %v102, %v147
  %v174 = vmul.f32 %v103, %v147
  %v175 = vmul.f32 %v104, %v147
  %v176 = vmul.f32 %v105, %v147
  %v177 = vmul.f32 %v106, %v147
  %v178 = vmul.f32 %v107, %v147
  %v179 = vmul.f32 %v108, %v147
  %v180 = vmul.f32 %v109, %v147
  %v181 = vmul.f32 %v110, %v147
  %v182 = vmul.f32 %v111, %v147
  %v183 = vmul.f32 %v112, %v147
  %v184 = vmul.f32 %v113, %v147
  %v185 = vmul.f32 %v114, %v147
  %v186 = vmul.f32 %v115, %v147
  %v187 = vmul.f32 %v116, %v147
  %v188 = vmul.f32 %v117, %v147
  %v189 = vmul.f32 %v118, %v147
  %v190 = vmul.f32 %v119, %v147
  %v191 = vmul.f32 %v120, %v147
  %v192 = vmul.f32 %v121, %v147
  %v193 = vmul.f32 %v122, %v147
  %v194 = vmul.f32 %v123, %v147
  %v195 = vmul.f32 %v124, %v147
  %v196 = vmul.f32 %v125, %v147
  %v197 = vmul.f32 %v126, %v147
  %v198 = vmul.f32 %v127, %v147
  %v199 = vmul.f32 %v128, %v147
  %v200 = vmul.f32 %v129, %v147
  %v201 = vmul.f32 %v130, %v147
  %v202 = vmul.f32 %v131, %v147
  %v203 = vmul.f32 %v132, %v147
  %v204 = vmul.f32 %v133, %v147
  %v205 = vmul.f32 %v134, %v147
  %v206 = vmul.f32 %v135, %v147
  %v207 = vmul.f32 %v136, %v147
  %v208 = vmul.f32 %v137, %v147
  %v209 = vmul.f32 %v138, %v147
  %v210 = vmul.f32 %v139, %v147
  %v211 = vmul.f32 %v140, %v147
  %v212 = vmul.f32 %v141, %v147
  %v213 = vld [vmem:[%s2] sm:$0x1]
  %v215 = vlaneseq
  %v216 = vshrl.u32 %v215, 7
  %v217 = vsub.s32 0, %v216
  %v218 = vrot.slane %v213, %v217
  %v220 = vadd.f32 %v149, %v218
  %v221 = vadd.f32 %v150, %v218
  %v222 = vadd.f32 %v151, %v218
  %v223 = vadd.f32 %v152, %v218
  %v224 = vadd.f32 %v153, %v218
  %v225 = vadd.f32 %v154, %v218
  %v226 = vadd.f32 %v155, %v218
  %v227 = vadd.f32 %v156, %v218
  %v228 = vadd.f32 %v157, %v218
  %v229 = vadd.f32 %v158, %v218
  %v230 = vadd.f32 %v159, %v218
  %v231 = vadd.f32 %v160, %v218
  %v232 = vadd.f32 %v161, %v218
  %v233 = vadd.f32 %v162, %v218
  %v234 = vadd.f32 %v163, %v218
  %v235 = vadd.f32 %v164, %v218
  %v236 = vadd.f32 %v165, %v218
  %v237 = vadd.f32 %v166, %v218
  %v238 = vadd.f32 %v167, %v218
  %v239 = vadd.f32 %v168, %v218
  %v240 = vadd.f32 %v169, %v218
  %v241 = vadd.f32 %v170, %v218
  %v242 = vadd.f32 %v171, %v218
  %v243 = vadd.f32 %v172, %v218
  %v244 = vadd.f32 %v173, %v218
  %v245 = vadd.f32 %v174, %v218
  %v246 = vadd.f32 %v175, %v218
  %v247 = vadd.f32 %v176, %v218
  %v248 = vadd.f32 %v177, %v218
  %v249 = vadd.f32 %v178, %v218
  %v250 = vadd.f32 %v179, %v218
  %v251 = vadd.f32 %v180, %v218
  %v252 = vadd.f32 %v181, %v218
  %v253 = vadd.f32 %v182, %v218
  %v254 = vadd.f32 %v183, %v218
  %v255 = vadd.f32 %v184, %v218
  %v256 = vadd.f32 %v185, %v218
  %v257 = vadd.f32 %v186, %v218
  %v258 = vadd.f32 %v187, %v218
  %v259 = vadd.f32 %v188, %v218
  %v260 = vadd.f32 %v189, %v218
  %v261 = vadd.f32 %v190, %v218
  %v262 = vadd.f32 %v191, %v218
  %v263 = vadd.f32 %v192, %v218
  %v264 = vadd.f32 %v193, %v218
  %v265 = vadd.f32 %v194, %v218
  %v266 = vadd.f32 %v195, %v218
  %v267 = vadd.f32 %v196, %v218
  %v268 = vadd.f32 %v197, %v218
  %v269 = vadd.f32 %v198, %v218
  %v270 = vadd.f32 %v199, %v218
  %v271 = vadd.f32 %v200, %v218
  %v272 = vadd.f32 %v201, %v218
  %v273 = vadd.f32 %v202, %v218
  %v274 = vadd.f32 %v203, %v218
  %v275 = vadd.f32 %v204, %v218
  %v276 = vadd.f32 %v205, %v218
  %v277 = vadd.f32 %v206, %v218
  %v278 = vadd.f32 %v207, %v218
  %v279 = vadd.f32 %v208, %v218
  %v280 = vadd.f32 %v209, %v218
  %v281 = vadd.f32 %v210, %v218
  %v282 = vadd.f32 %v211, %v218
  %v283 = vadd.f32 %v212, %v218
  %v284 = vmax.f32 %v220, 0.0
  %v285 = vmax.f32 %v221, 0.0
  %v286 = vmax.f32 %v222, 0.0
  %v287 = vmax.f32 %v223, 0.0
  %v288 = vmax.f32 %v224, 0.0
  %v289 = vmax.f32 %v225, 0.0
  %v290 = vmax.f32 %v226, 0.0
  %v291 = vmax.f32 %v227, 0.0
  %v292 = vmax.f32 %v228, 0.0
  %v293 = vmax.f32 %v229, 0.0
  %v294 = vmax.f32 %v230, 0.0
  %v295 = vmax.f32 %v231, 0.0
  %v296 = vmax.f32 %v232, 0.0
  %v297 = vmax.f32 %v233, 0.0
  %v298 = vmax.f32 %v234, 0.0
  %v299 = vmax.f32 %v235, 0.0
  %v300 = vmax.f32 %v236, 0.0
  %v301 = vmax.f32 %v237, 0.0
  %v302 = vmax.f32 %v238, 0.0
  %v303 = vmax.f32 %v239, 0.0
  %v304 = vmax.f32 %v240, 0.0
  %v305 = vmax.f32 %v241, 0.0
  %v306 = vmax.f32 %v242, 0.0
  %v307 = vmax.f32 %v243, 0.0
  %v308 = vmax.f32 %v244, 0.0
  %v309 = vmax.f32 %v245, 0.0
  %v310 = vmax.f32 %v246, 0.0
  %v311 = vmax.f32 %v247, 0.0
  %v312 = vmax.f32 %v248, 0.0
  %v313 = vmax.f32 %v249, 0.0
  %v314 = vmax.f32 %v250, 0.0
  %v315 = vmax.f32 %v251, 0.0
  %v316 = vmax.f32 %v252, 0.0
  %v317 = vmax.f32 %v253, 0.0
  %v318 = vmax.f32 %v254, 0.0
  %v319 = vmax.f32 %v255, 0.0
  %v320 = vmax.f32 %v256, 0.0
  %v321 = vmax.f32 %v257, 0.0
  %v322 = vmax.f32 %v258, 0.0
  %v323 = vmax.f32 %v259, 0.0
  %v324 = vmax.f32 %v260, 0.0
  %v325 = vmax.f32 %v261, 0.0
  %v326 = vmax.f32 %v262, 0.0
  %v327 = vmax.f32 %v263, 0.0
  %v328 = vmax.f32 %v264, 0.0
  %v329 = vmax.f32 %v265, 0.0
  %v330 = vmax.f32 %v266, 0.0
  %v331 = vmax.f32 %v267, 0.0
  %v332 = vmax.f32 %v268, 0.0
  %v333 = vmax.f32 %v269, 0.0
  %v334 = vmax.f32 %v270, 0.0
  %v335 = vmax.f32 %v271, 0.0
  %v336 = vmax.f32 %v272, 0.0
  %v337 = vmax.f32 %v273, 0.0
  %v338 = vmax.f32 %v274, 0.0
  %v339 = vmax.f32 %v275, 0.0
  %v340 = vmax.f32 %v276, 0.0
  %v341 = vmax.f32 %v277, 0.0
  %v342 = vmax.f32 %v278, 0.0
  %v343 = vmax.f32 %v279, 0.0
  %v344 = vmax.f32 %v280, 0.0
  %v345 = vmax.f32 %v281, 0.0
  %v346 = vmax.f32 %v282, 0.0
  %v347 = vmax.f32 %v283, 0.0
  %348 = vst [vmem:[%s3] sm:$0xff] %v284
  %349 = vst [vmem:[%s3 + $0x8] sm:$0xff] %v285
  %350 = vst [vmem:[%s3 + $0x10] sm:$0xff] %v286
  %351 = vst [vmem:[%s3 + $0x18] sm:$0xff] %v287
  %352 = vst [vmem:[%s3 + $0x20] sm:$0xff] %v288
  %353 = vst [vmem:[%s3 + $0x28] sm:$0xff] %v289
  %354 = vst [vmem:[%s3 + $0x30] sm:$0xff] %v290
  %355 = vst [vmem:[%s3 + $0x38] sm:$0xff] %v291
  %356 = vst [vmem:[%s3 + $0x40] sm:$0xff] %v292
  %357 = vst [vmem:[%s3 + $0x48] sm:$0xff] %v293
  %358 = vst [vmem:[%s3 + $0x50] sm:$0xff] %v294
  %359 = vst [vmem:[%s3 + $0x58] sm:$0xff] %v295
  %360 = vst [vmem:[%s3 + $0x60] sm:$0xff] %v296
  %361 = vst [vmem:[%s3 + $0x68] sm:$0xff] %v297
  %362 = vst [vmem:[%s3 + $0x70] sm:$0xff] %v298
  %363 = vst [vmem:[%s3 + $0x78] sm:$0xff] %v299
  %364 = vst [vmem:[%s3 + $0x80] sm:$0xff] %v300
  %365 = vst [vmem:[%s3 + $0x88] sm:$0xff] %v301
  %366 = vst [vmem:[%s3 + $0x90] sm:$0xff] %v302
  %367 = vst [vmem:[%s3 + $0x98] sm:$0xff] %v303
  %368 = vst [vmem:[%s3 + $0xa0] sm:$0xff] %v304
  %369 = vst [vmem:[%s3 + $0xa8] sm:$0xff] %v305
  %370 = vst [vmem:[%s3 + $0xb0] sm:$0xff] %v306
  %371 = vst [vmem:[%s3 + $0xb8] sm:$0xff] %v307
  %372 = vst [vmem:[%s3 + $0xc0] sm:$0xff] %v308
  %373 = vst [vmem:[%s3 + $0xc8] sm:$0xff] %v309
  %374 = vst [vmem:[%s3 + $0xd0] sm:$0xff] %v310
  %375 = vst [vmem:[%s3 + $0xd8] sm:$0xff] %v311
  %376 = vst [vmem:[%s3 + $0xe0] sm:$0xff] %v312
  %377 = vst [vmem:[%s3 + $0xe8] sm:$0xff] %v313
  %378 = vst [vmem:[%s3 + $0xf0] sm:$0xff] %v314
  %379 = vst [vmem:[%s3 + $0xf8] sm:$0xff] %v315
  %380 = vst [vmem:[%s3 + $0x100] sm:$0xff] %v316
  %381 = vst [vmem:[%s3 + $0x108] sm:$0xff] %v317
  %382 = vst [vmem:[%s3 + $0x110] sm:$0xff] %v318
  %383 = vst [vmem:[%s3 + $0x118] sm:$0xff] %v319
  %384 = vst [vmem:[%s3 + $0x120] sm:$0xff] %v320
  %385 = vst [vmem:[%s3 + $0x128] sm:$0xff] %v321
  %386 = vst [vmem:[%s3 + $0x130] sm:$0xff] %v322
  %387 = vst [vmem:[%s3 + $0x138] sm:$0xff] %v323
  %388 = vst [vmem:[%s3 + $0x140] sm:$0xff] %v324
  %389 = vst [vmem:[%s3 + $0x148] sm:$0xff] %v325
  %390 = vst [vmem:[%s3 + $0x150] sm:$0xff] %v326
  %391 = vst [vmem:[%s3 + $0x158] sm:$0xff] %v327
  %392 = vst [vmem:[%s3 + $0x160] sm:$0xff] %v328
  %393 = vst [vmem:[%s3 + $0x168] sm:$0xff] %v329
  %394 = vst [vmem:[%s3 + $0x170] sm:$0xff] %v330
  %395 = vst [vmem:[%s3 + $0x178] sm:$0xff] %v331
  %396 = vst [vmem:[%s3 + $0x180] sm:$0xff] %v332
  %397 = vst [vmem:[%s3 + $0x188] sm:$0xff] %v333
  %398 = vst [vmem:[%s3 + $0x190] sm:$0xff] %v334
  %399 = vst [vmem:[%s3 + $0x198] sm:$0xff] %v335
  %400 = vst [vmem:[%s3 + $0x1a0] sm:$0xff] %v336
  %401 = vst [vmem:[%s3 + $0x1a8] sm:$0xff] %v337
  %402 = vst [vmem:[%s3 + $0x1b0] sm:$0xff] %v338
  %403 = vst [vmem:[%s3 + $0x1b8] sm:$0xff] %v339
  %404 = vst [vmem:[%s3 + $0x1c0] sm:$0xff] %v340
  %405 = vst [vmem:[%s3 + $0x1c8] sm:$0xff] %v341
  %406 = vst [vmem:[%s3 + $0x1d0] sm:$0xff] %v342
  %407 = vst [vmem:[%s3 + $0x1d8] sm:$0xff] %v343
  %408 = vst [vmem:[%s3 + $0x1e0] sm:$0xff] %v344
  %409 = vst [vmem:[%s3 + $0x1e8] sm:$0xff] %v345
  %410 = vst [vmem:[%s3 + $0x1f0] sm:$0xff] %v346
  %411 = vst [vmem:[%s3 + $0x1f8] sm:$0xff] %v347
  // Predicated region
  $region14: #{conv_norm_layer.3} parent=0 // pred_check
    _
  $region15: #{conv_norm_layer.3} parent=0 // pred_check_branch
    %413 = sbr.rel (0) target = $region17
  $region16: #{conv_norm_layer.3} parent=0 // pred_region
    _
  $region17: #{conv_norm_layer.3} parent=0 // pred_fallthru
    _
  // Predicated region
  $region18: #{conv_norm_layer.3} parent=0 // pred_check
    _
  $region19: #{conv_norm_layer.3} parent=0 // pred_check_branch
    %415 = sbr.rel (0) target = $region21
  $region20: #{conv_norm_layer.3} parent=0 // pred_region
    _
  $region21: #{conv_norm_layer.3} parent=0 // pred_fallthru
    _

// kernel: conv_norm_layer.2
$region0: #{conv_norm_layer.2}
  #allocation0 [shape = 'u32[]', space=smem, size = 0x4, offset = 0x4, fixed_abs, tag = 'smem constant byte address 0x4 - core index']
  #allocation1 [shape = 'u32[144,128]{1,0:T(1,128)}', space=vmem, size = 0x12000, scoped, tag = 'internal scratch']
  %s0 = inlined_call_operand.vmem [shape: bf16[512,36], index: 0, kind: input, shape index: {}]
  %s1 = inlined_call_operand.vmem [shape: bf16[36,128], index: 1, kind: input, shape index: {}]
  %s2 = inlined_call_operand.vmem [shape: bf16[512,128], index: 2, kind: output, shape index: {0}]
  %s3 = inlined_call_operand.vmem [shape: f32[1,8,128], index: 3, kind: output, shape index: {1}]
  %s4 = inlined_call_operand.vmem [shape: f32[1,8,128], index: 4, kind: output, shape index: {2}]
  %5 = xla_tuple %s2, %s3, %s4
  %s6 = sld [smem:[#allocation0]]
  $region34: #{conv_norm_layer.2} parent=0
    _
  %s8 = ssub.s32 1, %s6
  %s9 = scalar_select 0, %s8, %s6
  // Predicated region
  $region2: #{conv_norm_layer.2} parent=0 // pred_check
    _
  $region3: #{conv_norm_layer.2} parent=0 // pred_check_branch
    %11 = sbr.rel (0) target = $region5
  $region4: #{conv_norm_layer.2} parent=0 // pred_region
    _
  $region5: #{conv_norm_layer.2} parent=0 // pred_fallthru
    _
  // Predicated region
  $region6: #{conv_norm_layer.2} parent=0 // pred_check
    _
  $region7: #{conv_norm_layer.2} parent=0 // pred_check_branch
    %13 = sbr.rel (0) target = $region9
  $region8: #{conv_norm_layer.2} parent=0 // pred_region
    _
  $region9: #{conv_norm_layer.2} parent=0 // pred_fallthru
    _
  %v15 = vld [vmem:[%s0] sm:$0xf]
  %v16 = vld [vmem:[%s0 + $0x4] sm:$0xf]
  %v17 = vld [vmem:[%s0 + $0x8] sm:$0xf]
  %v18 = vld [vmem:[%s0 + $0xc] sm:$0xf]
  %v19 = vld [vmem:[%s0 + $0x10] sm:$0xf]
  %v20 = vld [vmem:[%s0 + $0x14] sm:$0xf]
  %v21 = vld [vmem:[%s0 + $0x18] sm:$0xf]
  %v22 = vld [vmem:[%s0 + $0x1c] sm:$0xf]
  %v23 = vld [vmem:[%s0 + $0x20] sm:$0xf]
  %v24 = vld [vmem:[%s0 + $0x24] sm:$0xf]
  %v25 = vld [vmem:[%s0 + $0x28] sm:$0xf]
  %v26 = vld [vmem:[%s0 + $0x2c] sm:$0xf]
  %v27 = vld [vmem:[%s0 + $0x30] sm:$0xf]
  %v28 = vld [vmem:[%s0 + $0x34] sm:$0xf]
  %v29 = vld [vmem:[%s0 + $0x38] sm:$0xf]
  %v30 = vld [vmem:[%s0 + $0x3c] sm:$0xf]
  %v31 = vld [vmem:[%s0 + $0x40] sm:$0xf]
  %v32 = vld [vmem:[%s0 + $0x44] sm:$0xf]
  %v33 = vld [vmem:[%s0 + $0x48] sm:$0xf]
  %v34 = vld [vmem:[%s0 + $0x4c] sm:$0xf]
  %v35 = vld [vmem:[%s0 + $0x50] sm:$0xf]
  %v36 = vld [vmem:[%s0 + $0x54] sm:$0xf]
  %v37 = vld [vmem:[%s0 + $0x58] sm:$0xf]
  %v38 = vld [vmem:[%s0 + $0x5c] sm:$0xf]
  %v39 = vld [vmem:[%s0 + $0x60] sm:$0xf]
  %v40 = vld [vmem:[%s0 + $0x64] sm:$0xf]
  %v41 = vld [vmem:[%s0 + $0x68] sm:$0xf]
  %v42 = vld [vmem:[%s0 + $0x6c] sm:$0xf]
  %v43 = vld [vmem:[%s0 + $0x70] sm:$0xf]
  %v44 = vld [vmem:[%s0 + $0x74] sm:$0xf]
  %v45 = vld [vmem:[%s0 + $0x78] sm:$0xf]
  %v46 = vld [vmem:[%s0 + $0x7c] sm:$0xf]
  %v47 = vld [vmem:[%s0 + $0x80] sm:$0xf]
  %v48 = vld [vmem:[%s0 + $0x84] sm:$0xf]
  %v49 = vld [vmem:[%s0 + $0x88] sm:$0xf]
  %v50 = vld [vmem:[%s0 + $0x8c] sm:$0xf]
  %v51 = vld [vmem:[%s0 + $0x90] sm:$0xf]
  %v52 = vld [vmem:[%s0 + $0x94] sm:$0xf]
  %v53 = vld [vmem:[%s0 + $0x98] sm:$0xf]
  %v54 = vld [vmem:[%s0 + $0x9c] sm:$0xf]
  %v55 = vld [vmem:[%s0 + $0xa0] sm:$0xf]
  %v56 = vld [vmem:[%s0 + $0xa4] sm:$0xf]
  %v57 = vld [vmem:[%s0 + $0xa8] sm:$0xf]
  %v58 = vld [vmem:[%s0 + $0xac] sm:$0xf]
  %v59 = vld [vmem:[%s0 + $0xb0] sm:$0xf]
  %v60 = vld [vmem:[%s0 + $0xb4] sm:$0xf]
  %v61 = vld [vmem:[%s0 + $0xb8] sm:$0xf]
  %v62 = vld [vmem:[%s0 + $0xbc] sm:$0xf]
  %v63 = vld [vmem:[%s0 + $0xc0] sm:$0xf]
  %v64 = vld [vmem:[%s0 + $0xc4] sm:$0xf]
  %v65 = vld [vmem:[%s0 + $0xc8] sm:$0xf]
  %v66 = vld [vmem:[%s0 + $0xcc] sm:$0xf]
  %v67 = vld [vmem:[%s0 + $0xd0] sm:$0xf]
  %v68 = vld [vmem:[%s0 + $0xd4] sm:$0xf]
  %v69 = vld [vmem:[%s0 + $0xd8] sm:$0xf]
  %v70 = vld [vmem:[%s0 + $0xdc] sm:$0xf]
  %v71 = vld [vmem:[%s0 + $0xe0] sm:$0xf]
  %v72 = vld [vmem:[%s0 + $0xe4] sm:$0xf]
  %v73 = vld [vmem:[%s0 + $0xe8] sm:$0xf]
  %v74 = vld [vmem:[%s0 + $0xec] sm:$0xf]
  %v75 = vld [vmem:[%s0 + $0xf0] sm:$0xf]
  %v76 = vld [vmem:[%s0 + $0xf4] sm:$0xf]
  %v77 = vld [vmem:[%s0 + $0xf8] sm:$0xf]
  %v78 = vld [vmem:[%s0 + $0xfc] sm:$0xf]
  %v79 = vld [vmem:[%s1] sm:$0xf]
  %v80 = vld [vmem:[%s1 + $0x4] sm:$0xf]
  %v81 = vld [vmem:[%s1 + $0x8] sm:$0xf]
  %v82 = vld [vmem:[%s1 + $0xc] sm:$0xf]
  %v83 = vld [vmem:[%s1 + $0x10] sm:$0x3]
  %v148 = vunpack.c.l.b16 %v15
  %v149 = vunpack.c.l.b16 %v16
  %v150 = vunpack.c.l.b16 %v17
  %v151 = vunpack.c.l.b16 %v18
  %v152 = vunpack.c.l.b16 %v19
  %v153 = vunpack.c.l.b16 %v20
  %v154 = vunpack.c.l.b16 %v21
  %v155 = vunpack.c.l.b16 %v22
  %v156 = vunpack.c.l.b16 %v23
  %v157 = vunpack.c.l.b16 %v24
  %v158 = vunpack.c.l.b16 %v25
  %v159 = vunpack.c.l.b16 %v26
  %v160 = vunpack.c.l.b16 %v27
  %v161 = vunpack.c.l.b16 %v28
  %v162 = vunpack.c.l.b16 %v29
  %v163 = vunpack.c.l.b16 %v30
  %v164 = vunpack.c.l.b16 %v31
  %v165 = vunpack.c.l.b16 %v32
  %v166 = vunpack.c.l.b16 %v33
  %v167 = vunpack.c.l.b16 %v34
  %v168 = vunpack.c.l.b16 %v35
  %v169 = vunpack.c.l.b16 %v36
  %v170 = vunpack.c.l.b16 %v37
  %v171 = vunpack.c.l.b16 %v38
  %v172 = vunpack.c.l.b16 %v39
  %v173 = vunpack.c.l.b16 %v40
  %v174 = vunpack.c.l.b16 %v41
  %v175 = vunpack.c.l.b16 %v42
  %v176 = vunpack.c.l.b16 %v43
  %v177 = vunpack.c.l.b16 %v44
  %v178 = vunpack.c.l.b16 %v45
  %v179 = vunpack.c.l.b16 %v46
  %v180 = vunpack.c.l.b16 %v47
  %v181 = vunpack.c.l.b16 %v48
  %v182 = vunpack.c.l.b16 %v49
  %v183 = vunpack.c.l.b16 %v50
  %v184 = vunpack.c.l.b16 %v51
  %v185 = vunpack.c.l.b16 %v52
  %v186 = vunpack.c.l.b16 %v53
  %v187 = vunpack.c.l.b16 %v54
  %v188 = vunpack.c.l.b16 %v55
  %v189 = vunpack.c.l.b16 %v56
  %v190 = vunpack.c.l.b16 %v57
  %v191 = vunpack.c.l.b16 %v58
  %v192 = vunpack.c.l.b16 %v59
  %v193 = vunpack.c.l.b16 %v60
  %v194 = vunpack.c.l.b16 %v61
  %v195 = vunpack.c.l.b16 %v62
  %v196 = vunpack.c.l.b16 %v63
  %v197 = vunpack.c.l.b16 %v64
  %v198 = vunpack.c.l.b16 %v65
  %v199 = vunpack.c.l.b16 %v66
  %v200 = vunpack.c.l.b16 %v67
  %v201 = vunpack.c.l.b16 %v68
  %v202 = vunpack.c.l.b16 %v69
  %v203 = vunpack.c.l.b16 %v70
  %v204 = vunpack.c.l.b16 %v71
  %v205 = vunpack.c.l.b16 %v72
  %v206 = vunpack.c.l.b16 %v73
  %v207 = vunpack.c.l.b16 %v74
  %v208 = vunpack.c.l.b16 %v75
  %v209 = vunpack.c.l.b16 %v76
  %v210 = vunpack.c.l.b16 %v77
  %v211 = vunpack.c.l.b16 %v78
  %v212 = vpack.c.b16 %v149, %v148
  %v213 = vpack.c.b16 %v151, %v150
  %v214 = vpack.c.b16 %v153, %v152
  %v215 = vpack.c.b16 %v155, %v154
  %v216 = vpack.c.b16 %v157, %v156
  %v217 = vpack.c.b16 %v159, %v158
  %v218 = vpack.c.b16 %v161, %v160
  %v219 = vpack.c.b16 %v163, %v162
  %v220 = vpack.c.b16 %v165, %v164
  %v221 = vpack.c.b16 %v167, %v166
  %v222 = vpack.c.b16 %v169, %v168
  %v223 = vpack.c.b16 %v171, %v170
  %v224 = vpack.c.b16 %v173, %v172
  %v225 = vpack.c.b16 %v175, %v174
  %v226 = vpack.c.b16 %v177, %v176
  %v227 = vpack.c.b16 %v179, %v178
  %v228 = vpack.c.b16 %v181, %v180
  %v229 = vpack.c.b16 %v183, %v182
  %v230 = vpack.c.b16 %v185, %v184
  %v231 = vpack.c.b16 %v187, %v186
  %v232 = vpack.c.b16 %v189, %v188
  %v233 = vpack.c.b16 %v191, %v190
  %v234 = vpack.c.b16 %v193, %v192
  %v235 = vpack.c.b16 %v195, %v194
  %v236 = vpack.c.b16 %v197, %v196
  %v237 = vpack.c.b16 %v199, %v198
  %v238 = vpack.c.b16 %v201, %v200
  %v239 = vpack.c.b16 %v203, %v202
  %v240 = vpack.c.b16 %v205, %v204
  %v241 = vpack.c.b16 %v207, %v206
  %v242 = vpack.c.b16 %v209, %v208
  %v243 = vpack.c.b16 %v211, %v210
  %v249 = vunpack.c.l.b16 %v79
  %v250 = vunpack.c.l.b16 %v80
  %v251 = vunpack.c.l.b16 %v81
  %v252 = vunpack.c.l.b16 %v82
  %v253 = vunpack.c.l.b16 %v83
  %v254 = vpack.c.b16 %v250, %v249
  %v255 = vpack.c.b16 %v252, %v251
  %v256 = vpack.c.b16 %v253, %v253
  %vm259 = vcmask 293888
  %v261 = vsel %vm259, %v212, 0
  %v264 = vsel %vm259, %v213, 0
  %v267 = vsel %vm259, %v214, 0
  %v270 = vsel %vm259, %v215, 0
  %v273 = vsel %vm259, %v216, 0
  %v276 = vsel %vm259, %v217, 0
  %v279 = vsel %vm259, %v218, 0
  %v282 = vsel %vm259, %v219, 0
  %v285 = vsel %vm259, %v220, 0
  %v288 = vsel %vm259, %v221, 0
  %v291 = vsel %vm259, %v222, 0
  %v294 = vsel %vm259, %v223, 0
  %v297 = vsel %vm259, %v224, 0
  %v300 = vsel %vm259, %v225, 0
  %v303 = vsel %vm259, %v226, 0
  %v306 = vsel %vm259, %v227, 0
  %v309 = vsel %vm259, %v228, 0
  %v312 = vsel %vm259, %v229, 0
  %v315 = vsel %vm259, %v230, 0
  %v318 = vsel %vm259, %v231, 0
  %v321 = vsel %vm259, %v232, 0
  %v324 = vsel %vm259, %v233, 0
  %v327 = vsel %vm259, %v234, 0
  %v330 = vsel %vm259, %v235, 0
  %v333 = vsel %vm259, %v236, 0
  %v336 = vsel %vm259, %v237, 0
  %v339 = vsel %vm259, %v238, 0
  %v342 = vsel %vm259, %v239, 0
  %v345 = vsel %vm259, %v240, 0
  %v348 = vsel %vm259, %v241, 0
  %v351 = vsel %vm259, %v242, 0
  %v354 = vsel %vm259, %v243, 0
  %vm356 = vcmask 1041408
  %v358 = vsel %vm356, %v256, 0
  %360 = vmatprep.subr.bf16.mxu0 0
  %361 = vmatpush1.bf16.msra.mxu0 0
  %362 = vmatprep.subr.bf16.mxu0 0
  %363 = vmatpush1.bf16.msra.mxu0 0
  %364 = vmatprep.subr.bf16.mxu0 0
  %365 = vmatpush1.bf16.msra.mxu0 0
  %366 = vmatprep.subr.bf16.mxu0 0
  %367 = vmatpush1.bf16.msra.mxu0 0
  %368 = vmatprep.subr.bf16.mxu0 0
  %369 = vmatpush1.bf16.msra.mxu0 0
  %370 = vmatprep.subr.bf16.mxu0 0
  %371 = vmatpush1.bf16.msra.mxu0 %v358
  %372 = vmatprep.subr.bf16.mxu0 0
  %373 = vmatpush1.bf16.msra.mxu0 %v255
  %374 = vmatprep.subr.bf16.mxu0 0
  %375 = vmatpush1.bf16.msra.mxu0 %v254
  %376 = vmatprep.subr.bf16.mxu0 0
  %377 = vmatpush2.bf16.msra.mxu0 0
  %378 = vmatprep.subr.bf16.mxu0 0
  %379 = vmatpush2.bf16.msra.mxu0 0
  %380 = vmatprep.subr.bf16.mxu0 0
  %381 = vmatpush2.bf16.msra.mxu0 0
  %382 = vmatprep.subr.bf16.mxu0 0
  %383 = vmatpush2.bf16.msra.mxu0 0
  %384 = vmatprep.subr.bf16.mxu0 0
  %385 = vmatpush2.bf16.msra.mxu0 0
  %386 = vmatprep.subr.bf16.mxu0 0
  %387 = vmatpush2.bf16.msra.mxu0 0
  %388 = vmatprep.subr.bf16.mxu0 0
  %389 = vmatpush2.bf16.msra.mxu0 0
  %390 = vmatprep.subr.bf16.mxu0 0
  %391 = vmatpush2.bf16.msra.mxu0 0
  %392 = vmatprep.mubr.bf16.mxu0 0
  %393 = vmatmul.mubr.bf16.gmra.mxu0 %v261
  %v394 = vpop.f32.mrf.mxu0
  %v395 = vadd.f32 0.0, %v394
  %v396 = vpop.f32.mrf.mxu0
  %v397 = vpop.f32.mrf.mxu0
  %v398 = vadd.f32 0.0, %v397
  %v399 = vpop.f32.mrf.mxu0
  %400 = vmatprep.mubr.bf16.mxu0 0
  %401 = vmatmul.mubr.bf16.gmra.mxu0 %v264
  %v402 = vpop.f32.mrf.mxu0
  %v403 = vadd.f32 0.0, %v402
  %v404 = vpop.f32.mrf.mxu0
  %v405 = vpop.f32.mrf.mxu0
  %v406 = vadd.f32 0.0, %v405
  %v407 = vpop.f32.mrf.mxu0
  %408 = vmatprep.mubr.bf16.mxu0 0
  %409 = vmatmul.mubr.bf16.gmra.mxu0 %v267
  %v410 = vpop.f32.mrf.mxu0
  %v411 = vadd.f32 0.0, %v410
  %v412 = vpop.f32.mrf.mxu0
  %v413 = vpop.f32.mrf.mxu0
  %v414 = vadd.f32 0.0, %v413
  %v415 = vpop.f32.mrf.mxu0
  %416 = vmatprep.mubr.bf16.mxu0 0
  %417 = vmatmul.mubr.bf16.gmra.mxu0 %v270
  %v418 = vpop.f32.mrf.mxu0
  %v419 = vadd.f32 0.0, %v418
  %v420 = vpop.f32.mrf.mxu0
  %v421 = vpop.f32.mrf.mxu0
  %v422 = vadd.f32 0.0, %v421
  %v423 = vpop.f32.mrf.mxu0
  %424 = vmatprep.mubr.bf16.mxu0 0
  %425 = vmatmul.mubr.bf16.gmra.mxu0 %v273
  %v426 = vpop.f32.mrf.mxu0
  %v427 = vadd.f32 0.0, %v426
  %v428 = vpop.f32.mrf.mxu0
  %v429 = vpop.f32.mrf.mxu0
  %v430 = vadd.f32 0.0, %v429
  %v431 = vpop.f32.mrf.mxu0
  %432 = vmatprep.mubr.bf16.mxu0 0
  %433 = vmatmul.mubr.bf16.gmra.mxu0 %v276
  %v434 = vpop.f32.mrf.mxu0
  %v435 = vadd.f32 0.0, %v434
  %v436 = vpop.f32.mrf.mxu0
  %v437 = vpop.f32.mrf.mxu0
  %v438 = vadd.f32 0.0, %v437
  %v439 = vpop.f32.mrf.mxu0
  %440 = vmatprep.mubr.bf16.mxu0 0
  %441 = vmatmul.mubr.bf16.gmra.mxu0 %v279
  %v442 = vpop.f32.mrf.mxu0
  %v443 = vadd.f32 0.0, %v442
  %v444 = vpop.f32.mrf.mxu0
  %v445 = vpop.f32.mrf.mxu0
  %v446 = vadd.f32 0.0, %v445
  %v447 = vpop.f32.mrf.mxu0
  %448 = vmatprep.mubr.bf16.mxu0 0
  %449 = vmatmul.mubr.bf16.gmra.mxu0 %v282
  %v450 = vpop.f32.mrf.mxu0
  %v451 = vadd.f32 0.0, %v450
  %v452 = vpop.f32.mrf.mxu0
  %v453 = vpop.f32.mrf.mxu0
  %v454 = vadd.f32 0.0, %v453
  %v455 = vpop.f32.mrf.mxu0
  %456 = vmatprep.mubr.bf16.mxu0 0
  %457 = vmatmul.mubr.bf16.gmra.mxu0 %v285
  %v458 = vpop.f32.mrf.mxu0
  %v459 = vadd.f32 0.0, %v458
  %v460 = vpop.f32.mrf.mxu0
  %v461 = vpop.f32.mrf.mxu0
  %v462 = vadd.f32 0.0, %v461
  %v463 = vpop.f32.mrf.mxu0
  %464 = vmatprep.mubr.bf16.mxu0 0
  %465 = vmatmul.mubr.bf16.gmra.mxu0 %v288
  %v466 = vpop.f32.mrf.mxu0
  %v467 = vadd.f32 0.0, %v466
  %v468 = vpop.f32.mrf.mxu0
  %v469 = vpop.f32.mrf.mxu0
  %v470 = vadd.f32 0.0, %v469
  %v471 = vpop.f32.mrf.mxu0
  %472 = vmatprep.mubr.bf16.mxu0 0
  %473 = vmatmul.mubr.bf16.gmra.mxu0 %v291
  %v474 = vpop.f32.mrf.mxu0
  %v475 = vadd.f32 0.0, %v474
  %v476 = vpop.f32.mrf.mxu0
  %v477 = vpop.f32.mrf.mxu0
  %v478 = vadd.f32 0.0, %v477
  %v479 = vpop.f32.mrf.mxu0
  %480 = vmatprep.mubr.bf16.mxu0 0
  %481 = vmatmul.mubr.bf16.gmra.mxu0 %v294
  %v482 = vpop.f32.mrf.mxu0
  %v483 = vadd.f32 0.0, %v482
  %v484 = vpop.f32.mrf.mxu0
  %v485 = vpop.f32.mrf.mxu0
  %v486 = vadd.f32 0.0, %v485
  %v487 = vpop.f32.mrf.mxu0
  %488 = vmatprep.mubr.bf16.mxu0 0
  %489 = vmatmul.mubr.bf16.gmra.mxu0 %v297
  %v490 = vpop.f32.mrf.mxu0
  %v491 = vadd.f32 0.0, %v490
  %v492 = vpop.f32.mrf.mxu0
  %v493 = vpop.f32.mrf.mxu0
  %v494 = vadd.f32 0.0, %v493
  %v495 = vpop.f32.mrf.mxu0
  %496 = vmatprep.mubr.bf16.mxu0 0
  %497 = vmatmul.mubr.bf16.gmra.mxu0 %v300
  %v498 = vpop.f32.mrf.mxu0
  %v499 = vadd.f32 0.0, %v498
  %v500 = vpop.f32.mrf.mxu0
  %v501 = vpop.f32.mrf.mxu0
  %v502 = vadd.f32 0.0, %v501
  %v503 = vpop.f32.mrf.mxu0
  %504 = vmatprep.mubr.bf16.mxu0 0
  %505 = vmatmul.mubr.bf16.gmra.mxu0 %v303
  %v506 = vpop.f32.mrf.mxu0
  %v507 = vadd.f32 0.0, %v506
  %v508 = vpop.f32.mrf.mxu0
  %v509 = vpop.f32.mrf.mxu0
  %v510 = vadd.f32 0.0, %v509
  %v511 = vpop.f32.mrf.mxu0
  %512 = vmatprep.mubr.bf16.mxu0 0
  %513 = vmatmul.mubr.bf16.gmra.mxu0 %v306
  %v514 = vpop.f32.mrf.mxu0
  %v515 = vadd.f32 0.0, %v514
  %v516 = vpop.f32.mrf.mxu0
  %v517 = vpop.f32.mrf.mxu0
  %v518 = vadd.f32 0.0, %v517
  %v519 = vpop.f32.mrf.mxu0
  %520 = vmatprep.mubr.bf16.mxu0 0
  %521 = vmatmul.mubr.bf16.gmra.mxu0 %v309
  %v522 = vpop.f32.mrf.mxu0
  %v523 = vadd.f32 0.0, %v522
  %v524 = vpop.f32.mrf.mxu0
  %v525 = vpop.f32.mrf.mxu0
  %v526 = vadd.f32 0.0, %v525
  %v527 = vpop.f32.mrf.mxu0
  %528 = vmatprep.mubr.bf16.mxu0 0
  %529 = vmatmul.mubr.bf16.gmra.mxu0 %v312
  %v530 = vpop.f32.mrf.mxu0
  %v531 = vadd.f32 0.0, %v530
  %v532 = vpop.f32.mrf.mxu0
  %v533 = vpop.f32.mrf.mxu0
  %v534 = vadd.f32 0.0, %v533
  %v535 = vpop.f32.mrf.mxu0
  %536 = vmatprep.mubr.bf16.mxu0 0
  %537 = vmatmul.mubr.bf16.gmra.mxu0 %v315
  %v538 = vpop.f32.mrf.mxu0
  %v539 = vadd.f32 0.0, %v538
  %v540 = vpop.f32.mrf.mxu0
  %v541 = vpop.f32.mrf.mxu0
  %v542 = vadd.f32 0.0, %v541
  %v543 = vpop.f32.mrf.mxu0
  %544 = vmatprep.mubr.bf16.mxu0 0
  %545 = vmatmul.mubr.bf16.gmra.mxu0 %v318
  %v546 = vpop.f32.mrf.mxu0
  %v547 = vadd.f32 0.0, %v546
  %v548 = vpop.f32.mrf.mxu0
  %v549 = vpop.f32.mrf.mxu0
  %v550 = vadd.f32 0.0, %v549
  %v551 = vpop.f32.mrf.mxu0
  %552 = vmatprep.mubr.bf16.mxu0 0
  %553 = vmatmul.mubr.bf16.gmra.mxu0 %v321
  %v554 = vpop.f32.mrf.mxu0
  %v555 = vadd.f32 0.0, %v554
  %v556 = vpop.f32.mrf.mxu0
  %v557 = vpop.f32.mrf.mxu0
  %v558 = vadd.f32 0.0, %v557
  %v559 = vpop.f32.mrf.mxu0
  %560 = vmatprep.mubr.bf16.mxu0 0
  %561 = vmatmul.mubr.bf16.gmra.mxu0 %v324
  %v562 = vpop.f32.mrf.mxu0
  %v563 = vadd.f32 0.0, %v562
  %v564 = vpop.f32.mrf.mxu0
  %v565 = vpop.f32.mrf.mxu0
  %v566 = vadd.f32 0.0, %v565
  %v567 = vpop.f32.mrf.mxu0
  %568 = vmatprep.mubr.bf16.mxu0 0
  %569 = vmatmul.mubr.bf16.gmra.mxu0 %v327
  %v570 = vpop.f32.mrf.mxu0
  %v571 = vadd.f32 0.0, %v570
  %v572 = vpop.f32.mrf.mxu0
  %v573 = vpop.f32.mrf.mxu0
  %v574 = vadd.f32 0.0, %v573
  %v575 = vpop.f32.mrf.mxu0
  %576 = vmatprep.mubr.bf16.mxu0 0
  %577 = vmatmul.mubr.bf16.gmra.mxu0 %v330
  %v578 = vpop.f32.mrf.mxu0
  %v579 = vadd.f32 0.0, %v578
  %v580 = vpop.f32.mrf.mxu0
  %v581 = vpop.f32.mrf.mxu0
  %v582 = vadd.f32 0.0, %v581
  %v583 = vpop.f32.mrf.mxu0
  %584 = vmatprep.mubr.bf16.mxu0 0
  %585 = vmatmul.mubr.bf16.gmra.mxu0 %v333
  %v586 = vpop.f32.mrf.mxu0
  %v587 = vadd.f32 0.0, %v586
  %v588 = vpop.f32.mrf.mxu0
  %v589 = vpop.f32.mrf.mxu0
  %v590 = vadd.f32 0.0, %v589
  %v591 = vpop.f32.mrf.mxu0
  %592 = vmatprep.mubr.bf16.mxu0 0
  %593 = vmatmul.mubr.bf16.gmra.mxu0 %v336
  %v594 = vpop.f32.mrf.mxu0
  %v595 = vadd.f32 0.0, %v594
  %v596 = vpop.f32.mrf.mxu0
  %v597 = vpop.f32.mrf.mxu0
  %v598 = vadd.f32 0.0, %v597
  %v599 = vpop.f32.mrf.mxu0
  %600 = vmatprep.mubr.bf16.mxu0 0
  %601 = vmatmul.mubr.bf16.gmra.mxu0 %v339
  %v602 = vpop.f32.mrf.mxu0
  %v603 = vadd.f32 0.0, %v602
  %v604 = vpop.f32.mrf.mxu0
  %v605 = vpop.f32.mrf.mxu0
  %v606 = vadd.f32 0.0, %v605
  %v607 = vpop.f32.mrf.mxu0
  %608 = vmatprep.mubr.bf16.mxu0 0
  %609 = vmatmul.mubr.bf16.gmra.mxu0 %v342
  %v610 = vpop.f32.mrf.mxu0
  %v611 = vadd.f32 0.0, %v610
  %v612 = vpop.f32.mrf.mxu0
  %v613 = vpop.f32.mrf.mxu0
  %v614 = vadd.f32 0.0, %v613
  %v615 = vpop.f32.mrf.mxu0
  %616 = vmatprep.mubr.bf16.mxu0 0
  %617 = vmatmul.mubr.bf16.gmra.mxu0 %v345
  %v618 = vpop.f32.mrf.mxu0
  %v619 = vadd.f32 0.0, %v618
  %v620 = vpop.f32.mrf.mxu0
  %v621 = vpop.f32.mrf.mxu0
  %v622 = vadd.f32 0.0, %v621
  %v623 = vpop.f32.mrf.mxu0
  %624 = vmatprep.mubr.bf16.mxu0 0
  %625 = vmatmul.mubr.bf16.gmra.mxu0 %v348
  %v626 = vpop.f32.mrf.mxu0
  %v627 = vadd.f32 0.0, %v626
  %v628 = vpop.f32.mrf.mxu0
  %v629 = vpop.f32.mrf.mxu0
  %v630 = vadd.f32 0.0, %v629
  %v631 = vpop.f32.mrf.mxu0
  %632 = vmatprep.mubr.bf16.mxu0 0
  %633 = vmatmul.mubr.bf16.gmra.mxu0 %v351
  %v634 = vpop.f32.mrf.mxu0
  %v635 = vadd.f32 0.0, %v634
  %v636 = vpop.f32.mrf.mxu0
  %v637 = vpop.f32.mrf.mxu0
  %v638 = vadd.f32 0.0, %v637
  %v639 = vpop.f32.mrf.mxu0
  %640 = vmatprep.mubr.bf16.mxu0 0
  %641 = vmatmul.mubr.bf16.gmra.mxu0 %v354
  %v642 = vpop.f32.mrf.mxu0
  %v643 = vadd.f32 0.0, %v642
  %v644 = vpop.f32.mrf.mxu0
  %v645 = vpop.f32.mrf.mxu0
  %v646 = vadd.f32 0.0, %v645
  %v647 = vpop.f32.mrf.mxu0
  %648 = vdwg.mxu0
  %v649 = vpack.c.bf16 %v398, %v395
  %v650 = vpack.c.bf16 %v406, %v403
  %v651 = vpack.c.bf16 %v414, %v411
  %v652 = vpack.c.bf16 %v422, %v419
  %v653 = vpack.c.bf16 %v430, %v427
  %v654 = vpack.c.bf16 %v438, %v435
  %v655 = vpack.c.bf16 %v446, %v443
  %v656 = vpack.c.bf16 %v454, %v451
  %v657 = vpack.c.bf16 %v462, %v459
  %v658 = vpack.c.bf16 %v470, %v467
  %v659 = vpack.c.bf16 %v478, %v475
  %v660 = vpack.c.bf16 %v486, %v483
  %v661 = vpack.c.bf16 %v494, %v491
  %v662 = vpack.c.bf16 %v502, %v499
  %v663 = vpack.c.bf16 %v510, %v507
  %v664 = vpack.c.bf16 %v518, %v515
  %v665 = vpack.c.bf16 %v526, %v523
  %v666 = vpack.c.bf16 %v534, %v531
  %v667 = vpack.c.bf16 %v542, %v539
  %v668 = vpack.c.bf16 %v550, %v547
  %v669 = vpack.c.bf16 %v558, %v555
  %v670 = vpack.c.bf16 %v566, %v563
  %v671 = vpack.c.bf16 %v574, %v571
  %v672 = vpack.c.bf16 %v582, %v579
  %v673 = vpack.c.bf16 %v590, %v587
  %v674 = vpack.c.bf16 %v598, %v595
  %v675 = vpack.c.bf16 %v606, %v603
  %v676 = vpack.c.bf16 %v614, %v611
  %v677 = vpack.c.bf16 %v622, %v619
  %v678 = vpack.c.bf16 %v630, %v627
  %v679 = vpack.c.bf16 %v638, %v635
  %v680 = vpack.c.bf16 %v646, %v643
  %v713 = vunpack.c.l.b16 %v649
  %v714 = vunpack.c.h.b16 %v649
  %v715 = vunpack.c.l.b16 %v650
  %v716 = vunpack.c.h.b16 %v650
  %v717 = vunpack.c.l.b16 %v651
  %v718 = vunpack.c.h.b16 %v651
  %v719 = vunpack.c.l.b16 %v652
  %v720 = vunpack.c.h.b16 %v652
  %v721 = vunpack.c.l.b16 %v653
  %v722 = vunpack.c.h.b16 %v653
  %v723 = vunpack.c.l.b16 %v654
  %v724 = vunpack.c.h.b16 %v654
  %v725 = vunpack.c.l.b16 %v655
  %v726 = vunpack.c.h.b16 %v655
  %v727 = vunpack.c.l.b16 %v656
  %v728 = vunpack.c.h.b16 %v656
  %v729 = vunpack.c.l.b16 %v657
  %v730 = vunpack.c.h.b16 %v657
  %v731 = vunpack.c.l.b16 %v658
  %v732 = vunpack.c.h.b16 %v658
  %v733 = vunpack.c.l.b16 %v659
  %v734 = vunpack.c.h.b16 %v659
  %v735 = vunpack.c.l.b16 %v660
  %v736 = vunpack.c.h.b16 %v660
  %v737 = vunpack.c.l.b16 %v661
  %v738 = vunpack.c.h.b16 %v661
  %v739 = vunpack.c.l.b16 %v662
  %v740 = vunpack.c.h.b16 %v662
  %v741 = vunpack.c.l.b16 %v663
  %v742 = vunpack.c.h.b16 %v663
  %v743 = vunpack.c.l.b16 %v664
  %v744 = vunpack.c.h.b16 %v664
  %v745 = vunpack.c.l.b16 %v665
  %v746 = vunpack.c.h.b16 %v665
  %v747 = vunpack.c.l.b16 %v666
  %v748 = vunpack.c.h.b16 %v666
  %v749 = vunpack.c.l.b16 %v667
  %v750 = vunpack.c.h.b16 %v667
  %v751 = vunpack.c.l.b16 %v668
  %v752 = vunpack.c.h.b16 %v668
  %v753 = vunpack.c.l.b16 %v669
  %v754 = vunpack.c.h.b16 %v669
  %v755 = vunpack.c.l.b16 %v670
  %v756 = vunpack.c.h.b16 %v670
  %v757 = vunpack.c.l.b16 %v671
  %v758 = vunpack.c.h.b16 %v671
  %v759 = vunpack.c.l.b16 %v672
  %v760 = vunpack.c.h.b16 %v672
  %v761 = vunpack.c.l.b16 %v673
  %v762 = vunpack.c.h.b16 %v673
  %v763 = vunpack.c.l.b16 %v674
  %v764 = vunpack.c.h.b16 %v674
  %v765 = vunpack.c.l.b16 %v675
  %v766 = vunpack.c.h.b16 %v675
  %v767 = vunpack.c.l.b16 %v676
  %v768 = vunpack.c.h.b16 %v676
  %v769 = vunpack.c.l.b16 %v677
  %v770 = vunpack.c.h.b16 %v677
  %v771 = vunpack.c.l.b16 %v678
  %v772 = vunpack.c.h.b16 %v678
  %v773 = vunpack.c.l.b16 %v679
  %v774 = vunpack.c.h.b16 %v679
  %v775 = vunpack.c.l.b16 %v680
  %v776 = vunpack.c.h.b16 %v680
  %v777 = vpack.c.b16 %v713, %v713
  %v778 = vpack.c.b16 %v714, %v714
  %v779 = vpack.c.b16 %v715, %v715
  %v780 = vpack.c.b16 %v716, %v716
  %v781 = vpack.c.b16 %v717, %v717
  %v782 = vpack.c.b16 %v718, %v718
  %v783 = vpack.c.b16 %v719, %v719
  %v784 = vpack.c.b16 %v720, %v720
  %v785 = vpack.c.b16 %v721, %v721
  %v786 = vpack.c.b16 %v722, %v722
  %v787 = vpack.c.b16 %v723, %v723
  %v788 = vpack.c.b16 %v724, %v724
  %v789 = vpack.c.b16 %v725, %v725
  %v790 = vpack.c.b16 %v726, %v726
  %v791 = vpack.c.b16 %v727, %v727
  %v792 = vpack.c.b16 %v728, %v728
  %v793 = vpack.c.b16 %v729, %v729
  %v794 = vpack.c.b16 %v730, %v730
  %v795 = vpack.c.b16 %v731, %v731
  %v796 = vpack.c.b16 %v732, %v732
  %v797 = vpack.c.b16 %v733, %v733
  %v798 = vpack.c.b16 %v734, %v734
  %v799 = vpack.c.b16 %v735, %v735
  %v800 = vpack.c.b16 %v736, %v736
  %v801 = vpack.c.b16 %v737, %v737
  %v802 = vpack.c.b16 %v738, %v738
  %v803 = vpack.c.b16 %v739, %v739
  %v804 = vpack.c.b16 %v740, %v740
  %v805 = vpack.c.b16 %v741, %v741
  %v806 = vpack.c.b16 %v742, %v742
  %v807 = vpack.c.b16 %v743, %v743
  %v808 = vpack.c.b16 %v744, %v744
  %v809 = vpack.c.b16 %v745, %v745
  %v810 = vpack.c.b16 %v746, %v746
  %v811 = vpack.c.b16 %v747, %v747
  %v812 = vpack.c.b16 %v748, %v748
  %v813 = vpack.c.b16 %v749, %v749
  %v814 = vpack.c.b16 %v750, %v750
  %v815 = vpack.c.b16 %v751, %v751
  %v816 = vpack.c.b16 %v752, %v752
  %v817 = vpack.c.b16 %v753, %v753
  %v818 = vpack.c.b16 %v754, %v754
  %v819 = vpack.c.b16 %v755, %v755
  %v820 = vpack.c.b16 %v756, %v756
  %v821 = vpack.c.b16 %v757, %v757
  %v822 = vpack.c.b16 %v758, %v758
  %v823 = vpack.c.b16 %v759, %v759
  %v824 = vpack.c.b16 %v760, %v760
  %v825 = vpack.c.b16 %v761, %v761
  %v826 = vpack.c.b16 %v762, %v762
  %v827 = vpack.c.b16 %v763, %v763
  %v828 = vpack.c.b16 %v764, %v764
  %v829 = vpack.c.b16 %v765, %v765
  %v830 = vpack.c.b16 %v766, %v766
  %v831 = vpack.c.b16 %v767, %v767
  %v832 = vpack.c.b16 %v768, %v768
  %v833 = vpack.c.b16 %v769, %v769
  %v834 = vpack.c.b16 %v770, %v770
  %v835 = vpack.c.b16 %v771, %v771
  %v836 = vpack.c.b16 %v772, %v772
  %v837 = vpack.c.b16 %v773, %v773
  %v838 = vpack.c.b16 %v774, %v774
  %v839 = vpack.c.b16 %v775, %v775
  %v840 = vpack.c.b16 %v776, %v776
  %905 = vst [vmem:[%s2] sm:$0xf] %v777
  %906 = vst [vmem:[%s2 + $0x4] sm:$0xf] %v778
  %907 = vst [vmem:[%s2 + $0x8] sm:$0xf] %v779
  %908 = vst [vmem:[%s2 + $0xc] sm:$0xf] %v780
  %909 = vst [vmem:[%s2 + $0x10] sm:$0xf] %v781
  %910 = vst [vmem:[%s2 + $0x14] sm:$0xf] %v782
  %911 = vst [vmem:[%s2 + $0x18] sm:$0xf] %v783
  %912 = vst [vmem:[%s2 + $0x1c] sm:$0xf] %v784
  %913 = vst [vmem:[%s2 + $0x20] sm:$0xf] %v785
  %914 = vst [vmem:[%s2 + $0x24] sm:$0xf] %v786
  %915 = vst [vmem:[%s2 + $0x28] sm:$0xf] %v787
  %916 = vst [vmem:[%s2 + $0x2c] sm:$0xf] %v788
  %917 = vst [vmem:[%s2 + $0x30] sm:$0xf] %v789
  %918 = vst [vmem:[%s2 + $0x34] sm:$0xf] %v790
  %919 = vst [vmem:[%s2 + $0x38] sm:$0xf] %v791
  %920 = vst [vmem:[%s2 + $0x3c] sm:$0xf] %v792
  %921 = vst [vmem:[%s2 + $0x40] sm:$0xf] %v793
  %922 = vst [vmem:[%s2 + $0x44] sm:$0xf] %v794
  %923 = vst [vmem:[%s2 + $0x48] sm:$0xf] %v795
  %924 = vst [vmem:[%s2 + $0x4c] sm:$0xf] %v796
  %925 = vst [vmem:[%s2 + $0x50] sm:$0xf] %v797
  %926 = vst [vmem:[%s2 + $0x54] sm:$0xf] %v798
  %927 = vst [vmem:[%s2 + $0x58] sm:$0xf] %v799
  %928 = vst [vmem:[%s2 + $0x5c] sm:$0xf] %v800
  %929 = vst [vmem:[%s2 + $0x60] sm:$0xf] %v801
  %930 = vst [vmem:[%s2 + $0x64] sm:$0xf] %v802
  %931 = vst [vmem:[%s2 + $0x68] sm:$0xf] %v803
  %932 = vst [vmem:[%s2 + $0x6c] sm:$0xf] %v804
  %933 = vst [vmem:[%s2 + $0x70] sm:$0xf] %v805
  %934 = vst [vmem:[%s2 + $0x74] sm:$0xf] %v806
  %935 = vst [vmem:[%s2 + $0x78] sm:$0xf] %v807
  %936 = vst [vmem:[%s2 + $0x7c] sm:$0xf] %v808
  %937 = vst [vmem:[%s2 + $0x80] sm:$0xf] %v809
  %938 = vst [vmem:[%s2 + $0x84] sm:$0xf] %v810
  %939 = vst [vmem:[%s2 + $0x88] sm:$0xf] %v811
  %940 = vst [vmem:[%s2 + $0x8c] sm:$0xf] %v812
  %941 = vst [vmem:[%s2 + $0x90] sm:$0xf] %v813
  %942 = vst [vmem:[%s2 + $0x94] sm:$0xf] %v814
  %943 = vst [vmem:[%s2 + $0x98] sm:$0xf] %v815
  %944 = vst [vmem:[%s2 + $0x9c] sm:$0xf] %v816
  %945 = vst [vmem:[%s2 + $0xa0] sm:$0xf] %v817
  %946 = vst [vmem:[%s2 + $0xa4] sm:$0xf] %v818
  %947 = vst [vmem:[%s2 + $0xa8] sm:$0xf] %v819
  %948 = vst [vmem:[%s2 + $0xac] sm:$0xf] %v820
  %949 = vst [vmem:[%s2 + $0xb0] sm:$0xf] %v821
  %950 = vst [vmem:[%s2 + $0xb4] sm:$0xf] %v822
  %951 = vst [vmem:[%s2 + $0xb8] sm:$0xf] %v823
  %952 = vst [vmem:[%s2 + $0xbc] sm:$0xf] %v824
  %953 = vst [vmem:[%s2 + $0xc0] sm:$0xf] %v825
  %954 = vst [vmem:[%s2 + $0xc4] sm:$0xf] %v826
  %955 = vst [vmem:[%s2 + $0xc8] sm:$0xf] %v827
  %956 = vst [vmem:[%s2 + $0xcc] sm:$0xf] %v828
  %957 = vst [vmem:[%s2 + $0xd0] sm:$0xf] %v829
  %958 = vst [vmem:[%s2 + $0xd4] sm:$0xf] %v830
  %959 = vst [vmem:[%s2 + $0xd8] sm:$0xf] %v831
  %960 = vst [vmem:[%s2 + $0xdc] sm:$0xf] %v832
  %961 = vst [vmem:[%s2 + $0xe0] sm:$0xf] %v833
  %962 = vst [vmem:[%s2 + $0xe4] sm:$0xf] %v834
  %963 = vst [vmem:[%s2 + $0xe8] sm:$0xf] %v835
  %964 = vst [vmem:[%s2 + $0xec] sm:$0xf] %v836
  %965 = vst [vmem:[%s2 + $0xf0] sm:$0xf] %v837
  %966 = vst [vmem:[%s2 + $0xf4] sm:$0xf] %v838
  %967 = vst [vmem:[%s2 + $0xf8] sm:$0xf] %v839
  %968 = vst [vmem:[%s2 + $0xfc] sm:$0xf] %v840
  %v969 = vadd.f32 %v395, %v398
  %v970 = vadd.f32 %v969, %v403
  %v971 = vadd.f32 %v970, %v406
  %v972 = vadd.f32 %v971, %v411
  %v973 = vadd.f32 %v972, %v414
  %v974 = vadd.f32 %v973, %v419
  %v975 = vadd.f32 %v974, %v422
  %v976 = vadd.f32 %v975, %v427
  %v977 = vadd.f32 %v976, %v430
  %v978 = vadd.f32 %v977, %v435
  %v979 = vadd.f32 %v978, %v438
  %v980 = vadd.f32 %v979, %v443
  %v981 = vadd.f32 %v980, %v446
  %v982 = vadd.f32 %v981, %v451
  %v983 = vadd.f32 %v982, %v454
  %v984 = vadd.f32 %v983, %v459
  %v985 = vadd.f32 %v984, %v462
  %v986 = vadd.f32 %v985, %v467
  %v987 = vadd.f32 %v986, %v470
  %v988 = vadd.f32 %v987, %v475
  %v989 = vadd.f32 %v988, %v478
  %v990 = vadd.f32 %v989, %v483
  %v991 = vadd.f32 %v990, %v486
  %v992 = vadd.f32 %v991, %v491
  %v993 = vadd.f32 %v992, %v494
  %v994 = vadd.f32 %v993, %v499
  %v995 = vadd.f32 %v994, %v502
  %v996 = vadd.f32 %v995, %v507
  %v997 = vadd.f32 %v996, %v510
  %v998 = vadd.f32 %v997, %v515
  %v999 = vadd.f32 %v998, %v518
  %v1000 = vadd.f32 %v999, %v523
  %v1001 = vadd.f32 %v1000, %v526
  %v1002 = vadd.f32 %v1001, %v531
  %v1003 = vadd.f32 %v1002, %v534
  %v1004 = vadd.f32 %v1003, %v539
  %v1005 = vadd.f32 %v1004, %v542
  %v1006 = vadd.f32 %v1005, %v547
  %v1007 = vadd.f32 %v1006, %v550
  %v1008 = vadd.f32 %v1007, %v555
  %v1009 = vadd.f32 %v1008, %v558
  %v1010 = vadd.f32 %v1009, %v563
  %v1011 = vadd.f32 %v1010, %v566
  %v1012 = vadd.f32 %v1011, %v571
  %v1013 = vadd.f32 %v1012, %v574
  %v1014 = vadd.f32 %v1013, %v579
  %v1015 = vadd.f32 %v1014, %v582
  %v1016 = vadd.f32 %v1015, %v587
  %v1017 = vadd.f32 %v1016, %v590
  %v1018 = vadd.f32 %v1017, %v595
  %v1019 = vadd.f32 %v1018, %v598
  %v1020 = vadd.f32 %v1019, %v603
  %v1021 = vadd.f32 %v1020, %v606
  %v1022 = vadd.f32 %v1021, %v611
  %v1023 = vadd.f32 %v1022, %v614
  %v1024 = vadd.f32 %v1023, %v619
  %v1025 = vadd.f32 %v1024, %v622
  %v1026 = vadd.f32 %v1025, %v627
  %v1027 = vadd.f32 %v1026, %v630
  %v1028 = vadd.f32 %v1027, %v635
  %v1029 = vadd.f32 %v1028, %v638
  %v1030 = vadd.f32 %v1029, %v643
  %v1031 = vadd.f32 %v1030, %v646
  %1032 = vst [vmem:[%s3] sm:$0xff] %v1031
  %v1033 = vmul.f32 %v395, %v395
  %v1034 = vmul.f32 %v398, %v398
  %v1035 = vmul.f32 %v403, %v403
  %v1036 = vmul.f32 %v406, %v406
  %v1037 = vmul.f32 %v411, %v411
  %v1038 = vmul.f32 %v414, %v414
  %v1039 = vmul.f32 %v419, %v419
  %v1040 = vmul.f32 %v422, %v422
  %v1041 = vmul.f32 %v427, %v427
  %v1042 = vmul.f32 %v430, %v430
  %v1043 = vmul.f32 %v435, %v435
  %v1044 = vmul.f32 %v438, %v438
  %v1045 = vmul.f32 %v443, %v443
  %v1046 = vmul.f32 %v446, %v446
  %v1047 = vmul.f32 %v451, %v451
  %v1048 = vmul.f32 %v454, %v454
  %v1049 = vmul.f32 %v459, %v459
  %v1050 = vmul.f32 %v462, %v462
  %v1051 = vmul.f32 %v467, %v467
  %v1052 = vmul.f32 %v470, %v470
  %v1053 = vmul.f32 %v475, %v475
  %v1054 = vmul.f32 %v478, %v478
  %v1055 = vmul.f32 %v483, %v483
  %v1056 = vmul.f32 %v486, %v486
  %v1057 = vmul.f32 %v491, %v491
  %v1058 = vmul.f32 %v494, %v494
  %v1059 = vmul.f32 %v499, %v499
  %v1060 = vmul.f32 %v502, %v502
  %v1061 = vmul.f32 %v507, %v507
  %v1062 = vmul.f32 %v510, %v510
  %v1063 = vmul.f32 %v515, %v515
  %v1064 = vmul.f32 %v518, %v518
  %v1065 = vmul.f32 %v523, %v523
  %v1066 = vmul.f32 %v526, %v526
  %v1067 = vmul.f32 %v531, %v531
  %v1068 = vmul.f32 %v534, %v534
  %v1069 = vmul.f32 %v539, %v539
  %v1070 = vmul.f32 %v542, %v542
  %v1071 = vmul.f32 %v547, %v547
  %v1072 = vmul.f32 %v550, %v550
  %v1073 = vmul.f32 %v555, %v555
  %v1074 = vmul.f32 %v558, %v558
  %v1075 = vmul.f32 %v563, %v563
  %v1076 = vmul.f32 %v566, %v566
  %v1077 = vmul.f32 %v571, %v571
  %v1078 = vmul.f32 %v574, %v574
  %v1079 = vmul.f32 %v579, %v579
  %v1080 = vmul.f32 %v582, %v582
  %v1081 = vmul.f32 %v587, %v587
  %v1082 = vmul.f32 %v590, %v590
  %v1083 = vmul.f32 %v595, %v595
  %v1084 = vmul.f32 %v598, %v598
  %v1085 = vmul.f32 %v603, %v603
  %v1086 = vmul.f32 %v606, %v606
  %v1087 = vmul.f32 %v611, %v611
  %v1088 = vmul.f32 %v614, %v614
  %v1089 = vmul.f32 %v619, %v619
  %v1090 = vmul.f32 %v622, %v622
  %v1091 = vmul.f32 %v627, %v627
  %v1092 = vmul.f32 %v630, %v630
  %v1093 = vmul.f32 %v635, %v635
  %v1094 = vmul.f32 %v638, %v638
  %v1095 = vmul.f32 %v643, %v643
  %v1096 = vmul.f32 %v646, %v646
  %v1097 = vadd.f32 %v1033, %v1034
  %v1098 = vadd.f32 %v1097, %v1035
  %v1099 = vadd.f32 %v1098, %v1036
  %v1100 = vadd.f32 %v1099, %v1037
  %v1101 = vadd.f32 %v1100, %v1038
  %v1102 = vadd.f32 %v1101, %v1039
  %v1103 = vadd.f32 %v1102, %v1040
  %v1104 = vadd.f32 %v1103, %v1041
  %v1105 = vadd.f32 %v1104, %v1042
  %v1106 = vadd.f32 %v1105, %v1043
  %v1107 = vadd.f32 %v1106, %v1044
  %v1108 = vadd.f32 %v1107, %v1045
  %v1109 = vadd.f32 %v1108, %v1046
  %v1110 = vadd.f32 %v1109, %v1047
  %v1111 = vadd.f32 %v1110, %v1048
  %v1112 = vadd.f32 %v1111, %v1049
  %v1113 = vadd.f32 %v1112, %v1050
  %v1114 = vadd.f32 %v1113, %v1051
  %v1115 = vadd.f32 %v1114, %v1052
  %v1116 = vadd.f32 %v1115, %v1053
  %v1117 = vadd.f32 %v1116, %v1054
  %v1118 = vadd.f32 %v1117, %v1055
  %v1119 = vadd.f32 %v1118, %v1056
  %v1120 = vadd.f32 %v1119, %v1057
  %v1121 = vadd.f32 %v1120, %v1058
  %v1122 = vadd.f32 %v1121, %v1059
  %v1123 = vadd.f32 %v1122, %v1060
  %v1124 = vadd.f32 %v1123, %v1061
  %v1125 = vadd.f32 %v1124, %v1062
  %v1126 = vadd.f32 %v1125, %v1063
  %v1127 = vadd.f32 %v1126, %v1064
  %v1128 = vadd.f32 %v1127, %v1065
  %v1129 = vadd.f32 %v1128, %v1066
  %v1130 = vadd.f32 %v1129, %v1067
  %v1131 = vadd.f32 %v1130, %v1068
  %v1132 = vadd.f32 %v1131, %v1069
  %v1133 = vadd.f32 %v1132, %v1070
  %v1134 = vadd.f32 %v1133, %v1071
  %v1135 = vadd.f32 %v1134, %v1072
  %v1136 = vadd.f32 %v1135, %v1073
  %v1137 = vadd.f32 %v1136, %v1074
  %v1138 = vadd.f32 %v1137, %v1075
  %v1139 = vadd.f32 %v1138, %v1076
  %v1140 = vadd.f32 %v1139, %v1077
  %v1141 = vadd.f32 %v1140, %v1078
  %v1142 = vadd.f32 %v1141, %v1079
  %v1143 = vadd.f32 %v1142, %v1080
  %v1144 = vadd.f32 %v1143, %v1081
  %v1145 = vadd.f32 %v1144, %v1082
  %v1146 = vadd.f32 %v1145, %v1083
  %v1147 = vadd.f32 %v1146, %v1084
  %v1148 = vadd.f32 %v1147, %v1085
  %v1149 = vadd.f32 %v1148, %v1086
  %v1150 = vadd.f32 %v1149, %v1087
  %v1151 = vadd.f32 %v1150, %v1088
  %v1152 = vadd.f32 %v1151, %v1089
  %v1153 = vadd.f32 %v1152, %v1090
  %v1154 = vadd.f32 %v1153, %v1091
  %v1155 = vadd.f32 %v1154, %v1092
  %v1156 = vadd.f32 %v1155, %v1093
  %v1157 = vadd.f32 %v1156, %v1094
  %v1158 = vadd.f32 %v1157, %v1095
  %v1159 = vadd.f32 %v1158, %v1096
  %1160 = vst [vmem:[%s4] sm:$0xff] %v1159
  // Predicated region
  $region10: #{conv_norm_layer.2} parent=0 // pred_check
    _
  $region11: #{conv_norm_layer.2} parent=0 // pred_check_branch
    %1162 = sbr.rel (0) target = $region13
  $region12: #{conv_norm_layer.2} parent=0 // pred_region
    _
  $region13: #{conv_norm_layer.2} parent=0 // pred_fallthru
    _
  // Predicated region
  $region14: #{conv_norm_layer.2} parent=0 // pred_check
    _
  $region15: #{conv_norm_layer.2} parent=0 // pred_check_branch
    %1164 = sbr.rel (0) target = $region17
  $region16: #{conv_norm_layer.2} parent=0 // pred_region
    _
  $region17: #{conv_norm_layer.2} parent=0 // pred_fallthru
    _
  // Predicated region
  $region18: #{conv_norm_layer.2} parent=0 // pred_check
    _
  $region19: #{conv_norm_layer.2} parent=0 // pred_check_branch
    %1166 = sbr.rel (0) target = $region21
  $region20: #{conv_norm_layer.2} parent=0 // pred_region
    _
  $region21: #{conv_norm_layer.2} parent=0 // pred_fallthru
    _
  // Predicated region
  $region22: #{conv_norm_layer.2} parent=0 // pred_check
    _
  $region23: #{conv_norm_layer.2} parent=0 // pred_check_branch
    %1168 = sbr.rel (0) target = $region25
  $region24: #{conv_norm_layer.2} parent=0 // pred_region
    _
  $region25: #{conv_norm_layer.2} parent=0 // pred_fallthru
    _
  // Predicated region
  $region26: #{conv_norm_layer.2} parent=0 // pred_check
    _
  $region27: #{conv_norm_layer.2} parent=0 // pred_check_branch
    %1170 = sbr.rel (0) target = $region29
  $region28: #{conv_norm_layer.2} parent=0 // pred_region
    _
  $region29: #{conv_norm_layer.2} parent=0 // pred_fallthru
    _
  // Predicated region
  $region30: #{conv_norm_layer.2} parent=0 // pred_check
    _
  $region31: #{conv_norm_layer.2} parent=0 // pred_check_branch
    %1172 = sbr.rel (0) target = $region33
  $region32: #{conv_norm_layer.2} parent=0 // pred_region
    _
  $region33: #{conv_norm_layer.2} parent=0 // pred_fallthru
    _

</llo_original>
